<compile_context>
chip_gen: v5e
topology: v5e:2x2
jax: 0.10.0
libtpu: 0.0.40
codegen_flags: <defaults>
</compile_context>

<pallas_src>
import functools

import jax
import jax.numpy as jnp
from jax.experimental import pallas as pl
from jax.experimental.pallas import tpu as pltpu


# ----------------------------- Pallas kernel ---------------------------------

def _decoder_gru_kernel(num_layers, time_block, *refs):
    """One grid step == one chunk of `time_block` decoder time steps.

    refs layout (inputs, outputs, scratch):
      gi_r_ref, gi_z_ref, gi_n_ref : (Tb, B, H)  precomputed layer-0 input gates
                                     (r/z include b_ih+b_hh, n includes b_ih only)
      h0_ref                       : (L, B, H)   initial hidden (encoder_states)
      layer 0                      : w_hh0 (3,H,H), b_hn0 (1,H)
      layers 1..L-1 (4 refs each)  : w_ih (3,H,H), w_hh (3,H,H),
                                     b_in (3,1,H)  [r/z folded, n = b_ih_n],
                                     b_hn (1,H)    [= b_hh_n]
      out_ref  (output)            : (Tb, B, H)  top-layer hidden per step
      hidden_ref (output)          : (L, B, H)   final hidden state
      h_scratch (VMEM scratch)     : (L, B, H)   hidden carried across chunks
    """
    gi_r_ref, gi_z_ref, gi_n_ref, h0_ref = refs[0], refs[1], refs[2], refs[3]

    idx = 4
    layer_refs = []
    # layer 0: only the recurrent weights + n-gate hidden bias live in-kernel.
    layer_refs.append((None, refs[idx], None, refs[idx + 1]))
    idx += 2
    for _ in range(1, num_layers):
        layer_refs.append((refs[idx], refs[idx + 1], refs[idx + 2], refs[idx + 3]))
        idx += 4

    out_ref, hidden_ref = refs[idx], refs[idx + 1]
    h_scratch = refs[-1]

    t = pl.program_id(0)

    @pl.when(t == 0)
    def _init():
        h_scratch[...] = h0_ref[...]

    # Hoist all weight/bias loads out of the unrolled time loop.
    weights = []
    for l, (wih_ref, whh_ref, bin_ref, bhn_ref) in enumerate(layer_refs):
        whh = whh_ref[...]                       # (3, H, H)
        bhn = bhn_ref[...]                       # (1, H)
        if l == 0:
            weights.append((None, (whh[0], whh[1], whh[2]), None, bhn))
        else:
            wih = wih_ref[...]                   # (3, H, H)
            bin_ = bin_ref[...]                  # (3, 1, H)
            weights.append(((wih[0], wih[1], wih[2]),
                            (whh[0], whh[1], whh[2]),
                            (bin_[0], bin_[1], bin_[2]),
                            bhn))

    # Hidden states carried as values across the chunk (no per-step VMEM churn).
    h_init = tuple(h_scratch[l] for l in range(num_layers))

    def step(i, hs):
        hs = list(hs)
        # Layer-0 input gates were precomputed over all time steps.
        g_r = gi_r_ref[i]                        # (B, H)
        g_z = gi_z_ref[i]
        g_n = gi_n_ref[i]
        x = None
        for l in range(num_layers):
            wih, whh, bin_, bhn = weights[l]
            h_prev = hs[l]
            if l > 0:
                g_r = jnp.dot(x, wih[0], preferred_element_type=jnp.float32) + bin_[0]
                g_z = jnp.dot(x, wih[1], preferred_element_type=jnp.float32) + bin_[1]
                g_n = jnp.dot(x, wih[2], preferred_element_type=jnp.float32) + bin_[2]
            hr = jnp.dot(h_prev, whh[0], preferred_element_type=jnp.float32)
            hz = jnp.dot(h_prev, whh[1], preferred_element_type=jnp.float32)
            hn = jnp.dot(h_prev, whh[2], preferred_element_type=jnp.float32) + bhn
            r = jax.nn.sigmoid(g_r + hr)
            z = jax.nn.sigmoid(g_z + hz)
            n = jnp.tanh(g_n + r * hn)
            h_new = (1.0 - z) * n + z * h_prev
            hs[l] = h_new
            x = h_new
        out_ref[i] = x                           # top-layer hidden for step i
        return tuple(hs)

    hs_final = jax.lax.fori_loop(0, time_block, step, h_init, unroll=True)

    for l in range(num_layers):
        h_scratch[l] = hs_final[l]

    @pl.when(t == pl.num_programs(0) - 1)
    def _finalize():
        hidden_ref[...] = h_scratch[...]


# ------------------------------ JAX wrapper -----------------------------------

def decoder_forward(decoder_inputs, encoder_states, params, time_block=None):
    """Reproduces Decoder.forward.

    decoder_inputs : (batch, seq_len) int32 token ids
    encoder_states : (num_layers, batch, hidden) float32
    returns (logits, hidden):
        logits : (seq_len, batch, vocab_size)
        hidden : (num_layers, batch, hidden)
    """
    emb_w = params["embedding"]                  # (V, E)
    gru_layers = params["gru"]                   # gate-major weights (r, z, n)
    w_lin, b_lin = params["linear_w"], params["linear_b"]

    num_layers = len(gru_layers)
    hidden = encoder_states.shape[-1]
    batch, seq_len = decoder_inputs.shape
    ebd = emb_w.shape[1]
    vocab = w_lin.shape[1]

    if time_block is None:
        time_block = next(d for d in (8, 4, 2, 1) if seq_len % d == 0)
    assert seq_len % time_block == 0
    grid_t = seq_len // time_block

    # ---- non-recurrent work hoisted to XLA (big, MXU-friendly matmuls) ------
    emb_x = jnp.transpose(emb_w[decoder_inputs], (1, 0, 2))        # (S, B, E)
    ctx = encoder_states[-1]                                       # (B, H)

    lyr0 = gru_layers[0]
    w_ih0 = lyr0["w_ih"]                                           # (3, E+H, H)
    w_ih0_emb = w_ih0[:, :ebd, :]                                  # (3, E, H)
    w_ih0_ctx = w_ih0[:, ebd:, :]                                  # (3, H, H)
    b_ih0, b_hh0 = lyr0["b_ih"], lyr0["b_hh"]                      # (3, H)

    # Layer-0 input gates batched over ALL time steps (one matmul), plus the
    # time-constant context contribution computed once (never repeated in HBM).
    gi0_emb = jnp.einsum("sbe,geh->gsbh", emb_x, w_ih0_emb)        # (3, S, B, H)
    gi0_ctx = jnp.einsum("bh,ghk->gbk", ctx, w_ih0_ctx)            # (3, B, H)
    bias0 = b_ih0 + b_hh0.at[2].set(0.0)       # fold b_hh into r,z gates only
    gi0 = gi0_emb + gi0_ctx[:, None] + bias0[:, None, None]        # (3, S, B, H)
    gi_r, gi_z, gi_n = gi0[0], gi0[1], gi0[2]                      # each (S, B, H)

    # ---- pack kernel operands ------------------------------------------------
    operands = [gi_r, gi_z, gi_n, encoder_states]
    in_specs = [
        pl.BlockSpec((time_block, batch, hidden), lambda t: (t, 0, 0)),
        pl.BlockSpec((time_block, batch, hidden), lambda t: (t, 0, 0)),
        pl.BlockSpec((time_block, batch, hidden), lambda t: (t, 0, 0)),
        pl.BlockSpec((num_layers, batch, hidden), lambda t: (0, 0, 0)),
    ]

    # layer 0 recurrent weights
    operands += [lyr0["w_hh"], b_hh0[2][None, :]]
    in_specs += [
        pl.BlockSpec((3, hidden, hidden), lambda t: (0, 0, 0)),
        pl.BlockSpec((1, hidden), lambda t: (0, 0)),
    ]

    # layers 1..L-1
    for l in range(1, num_layers):
        lyr = gru_layers[l]
        b_ih, b_hh = lyr["b_ih"], lyr["b_hh"]
        b_in = (b_ih + b_hh.at[2].set(0.0))[:, None, :]            # (3, 1, H)
        b_hn = b_hh[2][None, :]                                    # (1, H)
        operands += [lyr["w_ih"], lyr["w_hh"], b_in, b_hn]
        in_specs += [
            pl.BlockSpec((3, hidden, hidden), lambda t: (0, 0, 0)),
            pl.BlockSpec((3, hidden, hidden), lambda t: (0, 0, 0)),
            pl.BlockSpec((3, 1, hidden), lambda t: (0, 0, 0)),
            pl.BlockSpec((1, hidden), lambda t: (0, 0)),
        ]

    out_shape = (
        jax.ShapeDtypeStruct((seq_len, batch, hidden), jnp.float32),
        jax.ShapeDtypeStruct((num_layers, batch, hidden), jnp.float32),
    )
    out_specs = (
        pl.BlockSpec((time_block, batch, hidden), lambda t: (t, 0, 0)),
        pl.BlockSpec((num_layers, batch, hidden), lambda t: (0, 0, 0)),
    )

    kernel = functools.partial(_decoder_gru_kernel, num_layers, time_block)

    top_h, hidden_out = pl.pallas_call(
        kernel,
        out_shape=out_shape,
        grid_spec=pltpu.PrefetchScalarGridSpec(
            num_scalar_prefetch=0,
            grid=(grid_t,),
            in_specs=in_specs,
            out_specs=out_specs,
            scratch_shapes=[pltpu.VMEM((num_layers, batch, hidden), jnp.float32)],
        ),
        compiler_params=pltpu.CompilerParams(
            dimension_semantics=("arbitrary",),      # serial time recurrence
            vmem_limit_bytes=32 * 1024 * 1024,
        ),
    )(*operands)

    # Vocab projection hoisted out of the recurrence: one (S*B, H) x (H, V)
    # matmul handled by XLA with proper MXU tiling.
    logits = jnp.dot(top_h.reshape(seq_len * batch, hidden), w_lin,
                     preferred_element_type=jnp.float32) + b_lin
    logits = logits.reshape(seq_len, batch, vocab)
    return logits, hidden_out


# ----------------------- plain-JAX reference (for check) ----------------------

def decoder_reference(decoder_inputs, encoder_states, params):
    emb_w = params["embedding"]
    gru_layers = params["gru"]
    w_lin, b_lin = params["linear_w"], params["linear_b"]
    hidden = encoder_states.shape[-1]
    batch, seq_len = decoder_inputs.shape

    x = jnp.transpose(emb_w[decoder_inputs], (1, 0, 2))            # (S, B, E)
    ctx = jnp.broadcast_to(encoder_states[-1][None], (seq_len, batch, hidden))
    gru_in = jnp.concatenate([x, ctx], axis=-1)                    # (S, B, E+H)

    h = [encoder_states[l] for l in range(len(gru_layers))]
    outs = []
    for t in range(seq_len):
        xt = gru_in[t]
        for l, lyr in enumerate(gru_layers):
            w_ih, w_hh = lyr["w_ih"], lyr["w_hh"]                  # (3,in,H),(3,H,H)
            b_ih, b_hh = lyr["b_ih"], lyr["b_hh"]                  # (3,H)
            r = jax.nn.sigmoid(xt @ w_ih[0] + b_ih[0] + h[l] @ w_hh[0] + b_hh[0])
            z = jax.nn.sigmoid(xt @ w_ih[1] + b_ih[1] + h[l] @ w_hh[1] + b_hh[1])
            n = jnp.tanh(xt @ w_ih[2] + b_ih[2] + r * (h[l] @ w_hh[2] + b_hh[2]))
            h[l] = (1.0 - z) * n + z * h[l]
            xt = h[l]
        outs.append(xt)
    output = jnp.stack(outs, axis=0)
    logits = output @ w_lin + b_lin
    return logits, jnp.stack(h, axis=0)


# ----------------------------------- main --------------------------------------

def init_params(key, vocab_size, ebd_size, hidden_size, num_layers):
    keys = jax.random.split(key, 3 + 4 * num_layers)
    scale = 1.0 / jnp.sqrt(hidden_size)

    emb = jax.random.normal(keys[0], (vocab_size, ebd_size), jnp.float32)
    emb = emb.at[3].set(0.0)  # padding_idx=3 row zeroed (as nn.Embedding does)

    gru = []
    for l in range(num_layers):
        in_l = (ebd_size + hidden_size) if l == 0 else hidden_size
        k = keys[1 + 4 * l: 5 + 4 * l]
        gru.append({
            # gate-major (r, z, n): each gate is a lane-aligned (in, H) slab.
            "w_ih": jax.random.uniform(k[0], (3, in_l, hidden_size), jnp.float32, -scale, scale),
            "w_hh": jax.random.uniform(k[1], (3, hidden_size, hidden_size), jnp.float32, -scale, scale),
            "b_ih": jax.random.uniform(k[2], (3, hidden_size), jnp.float32, -scale, scale),
            "b_hh": jax.random.uniform(k[3], (3, hidden_size), jnp.float32, -scale, scale),
        })

    w_lin = jax.random.uniform(keys[-2], (hidden_size, vocab_size), jnp.float32, -scale, scale)
    b_lin = jax.random.uniform(keys[-1], (1, vocab_size), jnp.float32, -scale, scale)
    return {"embedding": emb, "gru": gru, "linear_w": w_lin, "linear_b": b_lin}


if __name__ == "__main__":
    vocab_size, ebd_size, hidden_size, num_layers = 40, 16, 32, 2
    batch, seq_len = 2, 8

    key = jax.random.PRNGKey(0)
    kp, kt, kh = jax.random.split(key, 3)

    params = init_params(kp, vocab_size, ebd_size, hidden_size, num_layers)
    decoder_inputs = jax.random.randint(kt, (batch, seq_len), 0, vocab_size, jnp.int32)
    encoder_states = jax.random.normal(kh, (num_layers, batch, hidden_size), jnp.float32)

    # time_block=4 -> grid of 2 chunks (exercises the cross-chunk hidden carry).
    logits, hidden = decoder_forward(decoder_inputs, encoder_states, params, time_block=4)
    logits = jax.block_until_ready(logits)
    hidden = jax.block_until_ready(hidden)

    ref_logits, ref_hidden = decoder_reference(decoder_inputs, encoder_states, params)
    assert logits.shape == (seq_len, batch, vocab_size)
    assert hidden.shape == (num_layers, batch, hidden_size)
    assert jnp.allclose(logits, ref_logits, atol=1e-4, rtol=1e-4)
    assert jnp.allclose(hidden, ref_hidden, atol=1e-4, rtol=1e-4)

    print("KERNEL_OK")
</pallas_src>

<mosaic_0001>
module attributes {stable_mosaic.version = 11 : i64} {
  func.func @_decoder_gru_kernel(%arg0: i32, %arg1: memref<4x2x32xf32, #tpu.memory_space<vmem>>, %arg2: memref<4x2x32xf32, #tpu.memory_space<vmem>>, %arg3: memref<4x2x32xf32, #tpu.memory_space<vmem>>, %arg4: memref<2x2x32xf32, #tpu.memory_space<vmem>>, %arg5: memref<3x32x32xf32, #tpu.memory_space<vmem>>, %arg6: memref<1x32xf32, #tpu.memory_space<vmem>>, %arg7: memref<3x32x32xf32, #tpu.memory_space<vmem>>, %arg8: memref<3x32x32xf32, #tpu.memory_space<vmem>>, %arg9: memref<3x1x32xf32, #tpu.memory_space<vmem>>, %arg10: memref<1x32xf32, #tpu.memory_space<vmem>>, %arg11: memref<4x2x32xf32, #tpu.memory_space<vmem>>, %arg12: memref<2x2x32xf32, #tpu.memory_space<vmem>>, %arg13: memref<2x2x32xf32, #tpu.memory_space<vmem>>) attributes {dimension_semantics = [#tpu.dimension_semantics<arbitrary>], iteration_bounds = array<i64: 2>, scalar_prefetch = 0 : i64, scratch_operands = 1 : i64, tpu.core_type = #tpu.core_type<tc>, window_params = [{transform_indices = @transform_0, window_bounds = array<i64: 4, 2, 32>}, {transform_indices = @transform_1, window_bounds = array<i64: 4, 2, 32>}, {transform_indices = @transform_2, window_bounds = array<i64: 4, 2, 32>}, {pipeline_mode = #tpu.pipeline_mode<synchronous>, transform_indices = @transform_3, window_bounds = array<i64: 2, 2, 32>}, {pipeline_mode = #tpu.pipeline_mode<synchronous>, transform_indices = @transform_4, window_bounds = array<i64: 3, 32, 32>}, {pipeline_mode = #tpu.pipeline_mode<synchronous>, transform_indices = @transform_5, window_bounds = array<i64: 1, 32>}, {pipeline_mode = #tpu.pipeline_mode<synchronous>, transform_indices = @transform_6, window_bounds = array<i64: 3, 32, 32>}, {pipeline_mode = #tpu.pipeline_mode<synchronous>, transform_indices = @transform_7, window_bounds = array<i64: 3, 32, 32>}, {pipeline_mode = #tpu.pipeline_mode<synchronous>, transform_indices = @transform_8, window_bounds = array<i64: 3, 1, 32>}, {pipeline_mode = #tpu.pipeline_mode<synchronous>, transform_indices = @transform_9, window_bounds = array<i64: 1, 32>}, {transform_indices = @transform_10, window_bounds = array<i64: 4, 2, 32>}, {pipeline_mode = #tpu.pipeline_mode<synchronous>, transform_indices = @transform_11, window_bounds = array<i64: 2, 2, 32>}]} {
    %c0_i32 = arith.constant 0 : i32
    %0 = arith.cmpi eq, %arg0, %c0_i32 : i32
    %1 = arith.extui %0 : i1 to i32
    %c0_i32_0 = arith.constant 0 : i32
    %2 = arith.cmpi ne, %1, %c0_i32_0 : i32
    scf.if %2 {
      %c0_121 = arith.constant 0 : index
      %c0_122 = arith.constant 0 : index
      %c0_123 = arith.constant 0 : index
      %334 = vector.load %arg4[%c0_121, %c0_122, %c0_123] : memref<2x2x32xf32, #tpu.memory_space<vmem>>, vector<2x2x32xf32>
      %c0_124 = arith.constant 0 : index
      %c0_125 = arith.constant 0 : index
      %c0_126 = arith.constant 0 : index
      %335 = vector.load %arg13[%c0_124, %c0_125, %c0_126] : memref<2x2x32xf32, #tpu.memory_space<vmem>>, vector<2x2x32xf32>
      tpu.vector_store %arg13[%c0_124, %c0_125, %c0_126], %334 {strides = array<i32>} : memref<2x2x32xf32, #tpu.memory_space<vmem>>, vector<2x2x32xf32>,
    } else {
    }
    %c0 = arith.constant 0 : index
    %c0_1 = arith.constant 0 : index
    %c0_2 = arith.constant 0 : index
    %3 = vector.load %arg5[%c0, %c0_1, %c0_2] : memref<3x32x32xf32, #tpu.memory_space<vmem>>, vector<3x32x32xf32>
    %c0_3 = arith.constant 0 : index
    %c0_4 = arith.constant 0 : index
    %4 = vector.load %arg6[%c0_3, %c0_4] : memref<1x32xf32, #tpu.memory_space<vmem>>, vector<1x32xf32>
    %5 = vector.extract_strided_slice %3 {offsets = [0, 0, 0], sizes = [1, 32, 32], strides = [1, 1, 1]} : vector<3x32x32xf32> to vector<1x32x32xf32>
    %6 = vector.shape_cast %5 : vector<1x32x32xf32> to vector<32x32xf32>
    %7 = vector.extract_strided_slice %3 {offsets = [1, 0, 0], sizes = [1, 32, 32], strides = [1, 1, 1]} : vector<3x32x32xf32> to vector<1x32x32xf32>
    %8 = vector.shape_cast %7 : vector<1x32x32xf32> to vector<32x32xf32>
    %9 = vector.extract_strided_slice %3 {offsets = [2, 0, 0], sizes = [1, 32, 32], strides = [1, 1, 1]} : vector<3x32x32xf32> to vector<1x32x32xf32>
    %10 = vector.shape_cast %9 : vector<1x32x32xf32> to vector<32x32xf32>
    %c0_5 = arith.constant 0 : index
    %c0_6 = arith.constant 0 : index
    %c0_7 = arith.constant 0 : index
    %11 = vector.load %arg8[%c0_5, %c0_6, %c0_7] : memref<3x32x32xf32, #tpu.memory_space<vmem>>, vector<3x32x32xf32>
    %c0_8 = arith.constant 0 : index
    %c0_9 = arith.constant 0 : index
    %12 = vector.load %arg10[%c0_8, %c0_9] : memref<1x32xf32, #tpu.memory_space<vmem>>, vector<1x32xf32>
    %c0_10 = arith.constant 0 : index
    %c0_11 = arith.constant 0 : index
    %c0_12 = arith.constant 0 : index
    %13 = vector.load %arg7[%c0_10, %c0_11, %c0_12] : memref<3x32x32xf32, #tpu.memory_space<vmem>>, vector<3x32x32xf32>
    %c0_13 = arith.constant 0 : index
    %c0_14 = arith.constant 0 : index
    %c0_15 = arith.constant 0 : index
    %14 = vector.load %arg9[%c0_13, %c0_14, %c0_15] : memref<3x1x32xf32, #tpu.memory_space<vmem>>, vector<3x1x32xf32>
    %15 = vector.extract_strided_slice %13 {offsets = [0, 0, 0], sizes = [1, 32, 32], strides = [1, 1, 1]} : vector<3x32x32xf32> to vector<1x32x32xf32>
    %16 = vector.shape_cast %15 : vector<1x32x32xf32> to vector<32x32xf32>
    %17 = vector.extract_strided_slice %13 {offsets = [1, 0, 0], sizes = [1, 32, 32], strides = [1, 1, 1]} : vector<3x32x32xf32> to vector<1x32x32xf32>
    %18 = vector.shape_cast %17 : vector<1x32x32xf32> to vector<32x32xf32>
    %19 = vector.extract_strided_slice %13 {offsets = [2, 0, 0], sizes = [1, 32, 32], strides = [1, 1, 1]} : vector<3x32x32xf32> to vector<1x32x32xf32>
    %20 = vector.shape_cast %19 : vector<1x32x32xf32> to vector<32x32xf32>
    %21 = vector.extract_strided_slice %11 {offsets = [0, 0, 0], sizes = [1, 32, 32], strides = [1, 1, 1]} : vector<3x32x32xf32> to vector<1x32x32xf32>
    %22 = vector.shape_cast %21 : vector<1x32x32xf32> to vector<32x32xf32>
    %23 = vector.extract_strided_slice %11 {offsets = [1, 0, 0], sizes = [1, 32, 32], strides = [1, 1, 1]} : vector<3x32x32xf32> to vector<1x32x32xf32>
    %24 = vector.shape_cast %23 : vector<1x32x32xf32> to vector<32x32xf32>
    %25 = vector.extract_strided_slice %11 {offsets = [2, 0, 0], sizes = [1, 32, 32], strides = [1, 1, 1]} : vector<3x32x32xf32> to vector<1x32x32xf32>
    %26 = vector.shape_cast %25 : vector<1x32x32xf32> to vector<32x32xf32>
    %27 = vector.extract_strided_slice %14 {offsets = [0, 0, 0], sizes = [1, 1, 32], strides = [1, 1, 1]} : vector<3x1x32xf32> to vector<1x1x32xf32>
    %28 = vector.shape_cast %27 : vector<1x1x32xf32> to vector<1x32xf32>
    %29 = vector.extract_strided_slice %14 {offsets = [1, 0, 0], sizes = [1, 1, 32], strides = [1, 1, 1]} : vector<3x1x32xf32> to vector<1x1x32xf32>
    %30 = vector.shape_cast %29 : vector<1x1x32xf32> to vector<1x32xf32>
    %31 = vector.extract_strided_slice %14 {offsets = [2, 0, 0], sizes = [1, 1, 32], strides = [1, 1, 1]} : vector<3x1x32xf32> to vector<1x1x32xf32>
    %32 = vector.shape_cast %31 : vector<1x1x32xf32> to vector<1x32xf32>
    %c0_16 = arith.constant 0 : index
    %c0_17 = arith.constant 0 : index
    %c0_18 = arith.constant 0 : index
    %33 = vector.load %arg13[%c0_16, %c0_17, %c0_18] : memref<2x2x32xf32, #tpu.memory_space<vmem>>, vector<1x2x32xf32>
    %34 = vector.shape_cast %33 : vector<1x2x32xf32> to vector<2x32xf32>
    %c1 = arith.constant 1 : index
    %c0_19 = arith.constant 0 : index
    %c0_20 = arith.constant 0 : index
    %35 = vector.load %arg13[%c1, %c0_19, %c0_20] : memref<2x2x32xf32, #tpu.memory_space<vmem>>, vector<1x2x32xf32>
    %36 = vector.shape_cast %35 : vector<1x2x32xf32> to vector<2x32xf32>
    %c0_i32_21 = arith.constant 0 : i32
    %37 = arith.index_cast %c0_i32_21 : i32 to index
    %c0_22 = arith.constant 0 : index
    %c0_23 = arith.constant 0 : index
    %38 = vector.load %arg1[%37, %c0_22, %c0_23] : memref<4x2x32xf32, #tpu.memory_space<vmem>>, vector<1x2x32xf32>
    %39 = vector.shape_cast %38 : vector<1x2x32xf32> to vector<2x32xf32>
    %40 = arith.index_cast %c0_i32_21 : i32 to index
    %c0_24 = arith.constant 0 : index
    %c0_25 = arith.constant 0 : index
    %41 = vector.load %arg2[%40, %c0_24, %c0_25] : memref<4x2x32xf32, #tpu.memory_space<vmem>>, vector<1x2x32xf32>
    %42 = vector.shape_cast %41 : vector<1x2x32xf32> to vector<2x32xf32>
    %43 = arith.index_cast %c0_i32_21 : i32 to index
    %c0_26 = arith.constant 0 : index
    %c0_27 = arith.constant 0 : index
    %44 = vector.load %arg3[%43, %c0_26, %c0_27] : memref<4x2x32xf32, #tpu.memory_space<vmem>>, vector<1x2x32xf32>
    %45 = vector.shape_cast %44 : vector<1x2x32xf32> to vector<2x32xf32>
    %cst = arith.constant dense<0.000000e+00> : vector<2x32xf32>
    %46 = tpu.matmul %34, %6, %cst {dimension_numbers = #tpu.dot_dimension_numbers<[1], [0], [0], [1], [0, 0, 1, 1], [], []>} : vector<2x32xf32>, vector<32x32xf32>, vector<2x32xf32> -> vector<2x32xf32>
    %cst_28 = arith.constant dense<0.000000e+00> : vector<2x32xf32>
    %47 = tpu.matmul %34, %8, %cst_28 {dimension_numbers = #tpu.dot_dimension_numbers<[1], [0], [0], [1], [0, 0, 1, 1], [], []>} : vector<2x32xf32>, vector<32x32xf32>, vector<2x32xf32> -> vector<2x32xf32>
    %cst_29 = arith.constant dense<0.000000e+00> : vector<2x32xf32>
    %48 = tpu.matmul %34, %10, %cst_29 {dimension_numbers = #tpu.dot_dimension_numbers<[1], [0], [0], [1], [0, 0, 1, 1], [], []>} : vector<2x32xf32>, vector<32x32xf32>, vector<2x32xf32> -> vector<2x32xf32>
    %49 = vector.broadcast %4 : vector<1x32xf32> to vector<2x32xf32>
    %50 = arith.addf %48, %49 : vector<2x32xf32>
    %51 = arith.addf %39, %46 : vector<2x32xf32>
    %52 = arith.negf %51 : vector<2x32xf32>
    %53 = math.exp %52 : vector<2x32xf32>
    %cst_30 = arith.constant 1.000000e+00 : f32
    %54 = vector.broadcast %cst_30 : f32 to vector<2x32xf32>
    %55 = arith.addf %54, %53 : vector<2x32xf32>
    %56 = arith.divf %54, %55 : vector<2x32xf32>
    %57 = arith.addf %42, %47 : vector<2x32xf32>
    %58 = arith.negf %57 : vector<2x32xf32>
    %59 = math.exp %58 : vector<2x32xf32>
    %cst_31 = arith.constant 1.000000e+00 : f32
    %60 = vector.broadcast %cst_31 : f32 to vector<2x32xf32>
    %61 = arith.addf %60, %59 : vector<2x32xf32>
    %62 = arith.divf %60, %61 : vector<2x32xf32>
    %63 = arith.mulf %56, %50 : vector<2x32xf32>
    %64 = arith.addf %45, %63 : vector<2x32xf32>
    %65 = math.tanh %64 : vector<2x32xf32>
    %cst_32 = arith.constant 1.000000e+00 : f32
    %66 = vector.broadcast %cst_32 : f32 to vector<2x32xf32>
    %67 = arith.subf %66, %62 : vector<2x32xf32>
    %68 = arith.mulf %67, %65 : vector<2x32xf32>
    %69 = arith.mulf %62, %34 : vector<2x32xf32>
    %70 = arith.addf %68, %69 : vector<2x32xf32>
    %cst_33 = arith.constant dense<0.000000e+00> : vector<2x32xf32>
    %71 = tpu.matmul %70, %16, %cst_33 {dimension_numbers = #tpu.dot_dimension_numbers<[1], [0], [0], [1], [0, 0, 1, 1], [], []>} : vector<2x32xf32>, vector<32x32xf32>, vector<2x32xf32> -> vector<2x32xf32>
    %72 = vector.broadcast %28 : vector<1x32xf32> to vector<2x32xf32>
    %73 = arith.addf %71, %72 : vector<2x32xf32>
    %cst_34 = arith.constant dense<0.000000e+00> : vector<2x32xf32>
    %74 = tpu.matmul %70, %18, %cst_34 {dimension_numbers = #tpu.dot_dimension_numbers<[1], [0], [0], [1], [0, 0, 1, 1], [], []>} : vector<2x32xf32>, vector<32x32xf32>, vector<2x32xf32> -> vector<2x32xf32>
    %75 = vector.broadcast %30 : vector<1x32xf32> to vector<2x32xf32>
    %76 = arith.addf %74, %75 : vector<2x32xf32>
    %cst_35 = arith.constant dense<0.000000e+00> : vector<2x32xf32>
    %77 = tpu.matmul %70, %20, %cst_35 {dimension_numbers = #tpu.dot_dimension_numbers<[1], [0], [0], [1], [0, 0, 1, 1], [], []>} : vector<2x32xf32>, vector<32x32xf32>, vector<2x32xf32> -> vector<2x32xf32>
    %78 = vector.broadcast %32 : vector<1x32xf32> to vector<2x32xf32>
    %79 = arith.addf %77, %78 : vector<2x32xf32>
    %cst_36 = arith.constant dense<0.000000e+00> : vector<2x32xf32>
    %80 = tpu.matmul %36, %22, %cst_36 {dimension_numbers = #tpu.dot_dimension_numbers<[1], [0], [0], [1], [0, 0, 1, 1], [], []>} : vector<2x32xf32>, vector<32x32xf32>, vector<2x32xf32> -> vector<2x32xf32>
    %cst_37 = arith.constant dense<0.000000e+00> : vector<2x32xf32>
    %81 = tpu.matmul %36, %24, %cst_37 {dimension_numbers = #tpu.dot_dimension_numbers<[1], [0], [0], [1], [0, 0, 1, 1], [], []>} : vector<2x32xf32>, vector<32x32xf32>, vector<2x32xf32> -> vector<2x32xf32>
    %cst_38 = arith.constant dense<0.000000e+00> : vector<2x32xf32>
    %82 = tpu.matmul %36, %26, %cst_38 {dimension_numbers = #tpu.dot_dimension_numbers<[1], [0], [0], [1], [0, 0, 1, 1], [], []>} : vector<2x32xf32>, vector<32x32xf32>, vector<2x32xf32> -> vector<2x32xf32>
    %83 = vector.broadcast %12 : vector<1x32xf32> to vector<2x32xf32>
    %84 = arith.addf %82, %83 : vector<2x32xf32>
    %85 = arith.addf %73, %80 : vector<2x32xf32>
    %86 = arith.negf %85 : vector<2x32xf32>
    %87 = math.exp %86 : vector<2x32xf32>
    %cst_39 = arith.constant 1.000000e+00 : f32
    %88 = vector.broadcast %cst_39 : f32 to vector<2x32xf32>
    %89 = arith.addf %88, %87 : vector<2x32xf32>
    %90 = arith.divf %88, %89 : vector<2x32xf32>
    %91 = arith.addf %76, %81 : vector<2x32xf32>
    %92 = arith.negf %91 : vector<2x32xf32>
    %93 = math.exp %92 : vector<2x32xf32>
    %cst_40 = arith.constant 1.000000e+00 : f32
    %94 = vector.broadcast %cst_40 : f32 to vector<2x32xf32>
    %95 = arith.addf %94, %93 : vector<2x32xf32>
    %96 = arith.divf %94, %95 : vector<2x32xf32>
    %97 = arith.mulf %90, %84 : vector<2x32xf32>
    %98 = arith.addf %79, %97 : vector<2x32xf32>
    %99 = math.tanh %98 : vector<2x32xf32>
    %cst_41 = arith.constant 1.000000e+00 : f32
    %100 = vector.broadcast %cst_41 : f32 to vector<2x32xf32>
    %101 = arith.subf %100, %96 : vector<2x32xf32>
    %102 = arith.mulf %101, %99 : vector<2x32xf32>
    %103 = arith.mulf %96, %36 : vector<2x32xf32>
    %104 = arith.addf %102, %103 : vector<2x32xf32>
    %105 = arith.index_cast %c0_i32_21 : i32 to index
    %c0_42 = arith.constant 0 : index
    %c0_43 = arith.constant 0 : index
    %106 = vector.load %arg11[%105, %c0_42, %c0_43] : memref<4x2x32xf32, #tpu.memory_space<vmem>>, vector<1x2x32xf32>
    %107 = vector.shape_cast %106 : vector<1x2x32xf32> to vector<2x32xf32>
    %108 = vector.shape_cast %104 : vector<2x32xf32> to vector<1x2x32xf32>
    tpu.vector_store %arg11[%105, %c0_42, %c0_43], %108 {strides = array<i32>} : memref<4x2x32xf32, #tpu.memory_space<vmem>>, vector<1x2x32xf32>,
    %c1_i32 = arith.constant 1 : i32
    %109 = arith.index_cast %c1_i32 : i32 to index
    %c0_44 = arith.constant 0 : index
    %c0_45 = arith.constant 0 : index
    %110 = vector.load %arg1[%109, %c0_44, %c0_45] : memref<4x2x32xf32, #tpu.memory_space<vmem>>, vector<1x2x32xf32>
    %111 = vector.shape_cast %110 : vector<1x2x32xf32> to vector<2x32xf32>
    %112 = arith.index_cast %c1_i32 : i32 to index
    %c0_46 = arith.constant 0 : index
    %c0_47 = arith.constant 0 : index
    %113 = vector.load %arg2[%112, %c0_46, %c0_47] : memref<4x2x32xf32, #tpu.memory_space<vmem>>, vector<1x2x32xf32>
    %114 = vector.shape_cast %113 : vector<1x2x32xf32> to vector<2x32xf32>
    %115 = arith.index_cast %c1_i32 : i32 to index
    %c0_48 = arith.constant 0 : index
    %c0_49 = arith.constant 0 : index
    %116 = vector.load %arg3[%115, %c0_48, %c0_49] : memref<4x2x32xf32, #tpu.memory_space<vmem>>, vector<1x2x32xf32>
    %117 = vector.shape_cast %116 : vector<1x2x32xf32> to vector<2x32xf32>
    %cst_50 = arith.constant dense<0.000000e+00> : vector<2x32xf32>
    %118 = tpu.matmul %70, %6, %cst_50 {dimension_numbers = #tpu.dot_dimension_numbers<[1], [0], [0], [1], [0, 0, 1, 1], [], []>} : vector<2x32xf32>, vector<32x32xf32>, vector<2x32xf32> -> vector<2x32xf32>
    %cst_51 = arith.constant dense<0.000000e+00> : vector<2x32xf32>
    %119 = tpu.matmul %70, %8, %cst_51 {dimension_numbers = #tpu.dot_dimension_numbers<[1], [0], [0], [1], [0, 0, 1, 1], [], []>} : vector<2x32xf32>, vector<32x32xf32>, vector<2x32xf32> -> vector<2x32xf32>
    %cst_52 = arith.constant dense<0.000000e+00> : vector<2x32xf32>
    %120 = tpu.matmul %70, %10, %cst_52 {dimension_numbers = #tpu.dot_dimension_numbers<[1], [0], [0], [1], [0, 0, 1, 1], [], []>} : vector<2x32xf32>, vector<32x32xf32>, vector<2x32xf32> -> vector<2x32xf32>
    %121 = vector.broadcast %4 : vector<1x32xf32> to vector<2x32xf32>
    %122 = arith.addf %120, %121 : vector<2x32xf32>
    %123 = arith.addf %111, %118 : vector<2x32xf32>
    %124 = arith.negf %123 : vector<2x32xf32>
    %125 = math.exp %124 : vector<2x32xf32>
    %cst_53 = arith.constant 1.000000e+00 : f32
    %126 = vector.broadcast %cst_53 : f32 to vector<2x32xf32>
    %127 = arith.addf %126, %125 : vector<2x32xf32>
    %128 = arith.divf %126, %127 : vector<2x32xf32>
    %129 = arith.addf %114, %119 : vector<2x32xf32>
    %130 = arith.negf %129 : vector<2x32xf32>
    %131 = math.exp %130 : vector<2x32xf32>
    %cst_54 = arith.constant 1.000000e+00 : f32
    %132 = vector.broadcast %cst_54 : f32 to vector<2x32xf32>
    %133 = arith.addf %132, %131 : vector<2x32xf32>
    %134 = arith.divf %132, %133 : vector<2x32xf32>
    %135 = arith.mulf %128, %122 : vector<2x32xf32>
    %136 = arith.addf %117, %135 : vector<2x32xf32>
    %137 = math.tanh %136 : vector<2x32xf32>
    %cst_55 = arith.constant 1.000000e+00 : f32
    %138 = vector.broadcast %cst_55 : f32 to vector<2x32xf32>
    %139 = arith.subf %138, %134 : vector<2x32xf32>
    %140 = arith.mulf %139, %137 : vector<2x32xf32>
    %141 = arith.mulf %134, %70 : vector<2x32xf32>
    %142 = arith.addf %140, %141 : vector<2x32xf32>
    %cst_56 = arith.constant dense<0.000000e+00> : vector<2x32xf32>
    %143 = tpu.matmul %142, %16, %cst_56 {dimension_numbers = #tpu.dot_dimension_numbers<[1], [0], [0], [1], [0, 0, 1, 1], [], []>} : vector<2x32xf32>, vector<32x32xf32>, vector<2x32xf32> -> vector<2x32xf32>
    %144 = vector.broadcast %28 : vector<1x32xf32> to vector<2x32xf32>
    %145 = arith.addf %143, %144 : vector<2x32xf32>
    %cst_57 = arith.constant dense<0.000000e+00> : vector<2x32xf32>
    %146 = tpu.matmul %142, %18, %cst_57 {dimension_numbers = #tpu.dot_dimension_numbers<[1], [0], [0], [1], [0, 0, 1, 1], [], []>} : vector<2x32xf32>, vector<32x32xf32>, vector<2x32xf32> -> vector<2x32xf32>
    %147 = vector.broadcast %30 : vector<1x32xf32> to vector<2x32xf32>
    %148 = arith.addf %146, %147 : vector<2x32xf32>
    %cst_58 = arith.constant dense<0.000000e+00> : vector<2x32xf32>
    %149 = tpu.matmul %142, %20, %cst_58 {dimension_numbers = #tpu.dot_dimension_numbers<[1], [0], [0], [1], [0, 0, 1, 1], [], []>} : vector<2x32xf32>, vector<32x32xf32>, vector<2x32xf32> -> vector<2x32xf32>
    %150 = vector.broadcast %32 : vector<1x32xf32> to vector<2x32xf32>
    %151 = arith.addf %149, %150 : vector<2x32xf32>
    %cst_59 = arith.constant dense<0.000000e+00> : vector<2x32xf32>
    %152 = tpu.matmul %104, %22, %cst_59 {dimension_numbers = #tpu.dot_dimension_numbers<[1], [0], [0], [1], [0, 0, 1, 1], [], []>} : vector<2x32xf32>, vector<32x32xf32>, vector<2x32xf32> -> vector<2x32xf32>
    %cst_60 = arith.constant dense<0.000000e+00> : vector<2x32xf32>
    %153 = tpu.matmul %104, %24, %cst_60 {dimension_numbers = #tpu.dot_dimension_numbers<[1], [0], [0], [1], [0, 0, 1, 1], [], []>} : vector<2x32xf32>, vector<32x32xf32>, vector<2x32xf32> -> vector<2x32xf32>
    %cst_61 = arith.constant dense<0.000000e+00> : vector<2x32xf32>
    %154 = tpu.matmul %104, %26, %cst_61 {dimension_numbers = #tpu.dot_dimension_numbers<[1], [0], [0], [1], [0, 0, 1, 1], [], []>} : vector<2x32xf32>, vector<32x32xf32>, vector<2x32xf32> -> vector<2x32xf32>
    %155 = vector.broadcast %12 : vector<1x32xf32> to vector<2x32xf32>
    %156 = arith.addf %154, %155 : vector<2x32xf32>
    %157 = arith.addf %145, %152 : vector<2x32xf32>
    %158 = arith.negf %157 : vector<2x32xf32>
    %159 = math.exp %158 : vector<2x32xf32>
    %cst_62 = arith.constant 1.000000e+00 : f32
    %160 = vector.broadcast %cst_62 : f32 to vector<2x32xf32>
    %161 = arith.addf %160, %159 : vector<2x32xf32>
    %162 = arith.divf %160, %161 : vector<2x32xf32>
    %163 = arith.addf %148, %153 : vector<2x32xf32>
    %164 = arith.negf %163 : vector<2x32xf32>
    %165 = math.exp %164 : vector<2x32xf32>
    %cst_63 = arith.constant 1.000000e+00 : f32
    %166 = vector.broadcast %cst_63 : f32 to vector<2x32xf32>
    %167 = arith.addf %166, %165 : vector<2x32xf32>
    %168 = arith.divf %166, %167 : vector<2x32xf32>
    %169 = arith.mulf %162, %156 : vector<2x32xf32>
    %170 = arith.addf %151, %169 : vector<2x32xf32>
    %171 = math.tanh %170 : vector<2x32xf32>
    %cst_64 = arith.constant 1.000000e+00 : f32
    %172 = vector.broadcast %cst_64 : f32 to vector<2x32xf32>
    %173 = arith.subf %172, %168 : vector<2x32xf32>
    %174 = arith.mulf %173, %171 : vector<2x32xf32>
    %175 = arith.mulf %168, %104 : vector<2x32xf32>
    %176 = arith.addf %174, %175 : vector<2x32xf32>
    %177 = arith.index_cast %c1_i32 : i32 to index
    %c0_65 = arith.constant 0 : index
    %c0_66 = arith.constant 0 : index
    %178 = vector.load %arg11[%177, %c0_65, %c0_66] : memref<4x2x32xf32, #tpu.memory_space<vmem>>, vector<1x2x32xf32>
    %179 = vector.shape_cast %178 : vector<1x2x32xf32> to vector<2x32xf32>
    %180 = vector.shape_cast %176 : vector<2x32xf32> to vector<1x2x32xf32>
    tpu.vector_store %arg11[%177, %c0_65, %c0_66], %180 {strides = array<i32>} : memref<4x2x32xf32, #tpu.memory_space<vmem>>, vector<1x2x32xf32>,
    %c2_i32 = arith.constant 2 : i32
    %181 = arith.index_cast %c2_i32 : i32 to index
    %c0_67 = arith.constant 0 : index
    %c0_68 = arith.constant 0 : index
    %182 = vector.load %arg1[%181, %c0_67, %c0_68] : memref<4x2x32xf32, #tpu.memory_space<vmem>>, vector<1x2x32xf32>
    %183 = vector.shape_cast %182 : vector<1x2x32xf32> to vector<2x32xf32>
    %184 = arith.index_cast %c2_i32 : i32 to index
    %c0_69 = arith.constant 0 : index
    %c0_70 = arith.constant 0 : index
    %185 = vector.load %arg2[%184, %c0_69, %c0_70] : memref<4x2x32xf32, #tpu.memory_space<vmem>>, vector<1x2x32xf32>
    %186 = vector.shape_cast %185 : vector<1x2x32xf32> to vector<2x32xf32>
    %187 = arith.index_cast %c2_i32 : i32 to index
    %c0_71 = arith.constant 0 : index
    %c0_72 = arith.constant 0 : index
    %188 = vector.load %arg3[%187, %c0_71, %c0_72] : memref<4x2x32xf32, #tpu.memory_space<vmem>>, vector<1x2x32xf32>
    %189 = vector.shape_cast %188 : vector<1x2x32xf32> to vector<2x32xf32>
    %cst_73 = arith.constant dense<0.000000e+00> : vector<2x32xf32>
    %190 = tpu.matmul %142, %6, %cst_73 {dimension_numbers = #tpu.dot_dimension_numbers<[1], [0], [0], [1], [0, 0, 1, 1], [], []>} : vector<2x32xf32>, vector<32x32xf32>, vector<2x32xf32> -> vector<2x32xf32>
    %cst_74 = arith.constant dense<0.000000e+00> : vector<2x32xf32>
    %191 = tpu.matmul %142, %8, %cst_74 {dimension_numbers = #tpu.dot_dimension_numbers<[1], [0], [0], [1], [0, 0, 1, 1], [], []>} : vector<2x32xf32>, vector<32x32xf32>, vector<2x32xf32> -> vector<2x32xf32>
    %cst_75 = arith.constant dense<0.000000e+00> : vector<2x32xf32>
    %192 = tpu.matmul %142, %10, %cst_75 {dimension_numbers = #tpu.dot_dimension_numbers<[1], [0], [0], [1], [0, 0, 1, 1], [], []>} : vector<2x32xf32>, vector<32x32xf32>, vector<2x32xf32> -> vector<2x32xf32>
    %193 = vector.broadcast %4 : vector<1x32xf32> to vector<2x32xf32>
    %194 = arith.addf %192, %193 : vector<2x32xf32>
    %195 = arith.addf %183, %190 : vector<2x32xf32>
    %196 = arith.negf %195 : vector<2x32xf32>
    %197 = math.exp %196 : vector<2x32xf32>
    %cst_76 = arith.constant 1.000000e+00 : f32
    %198 = vector.broadcast %cst_76 : f32 to vector<2x32xf32>
    %199 = arith.addf %198, %197 : vector<2x32xf32>
    %200 = arith.divf %198, %199 : vector<2x32xf32>
    %201 = arith.addf %186, %191 : vector<2x32xf32>
    %202 = arith.negf %201 : vector<2x32xf32>
    %203 = math.exp %202 : vector<2x32xf32>
    %cst_77 = arith.constant 1.000000e+00 : f32
    %204 = vector.broadcast %cst_77 : f32 to vector<2x32xf32>
    %205 = arith.addf %204, %203 : vector<2x32xf32>
    %206 = arith.divf %204, %205 : vector<2x32xf32>
    %207 = arith.mulf %200, %194 : vector<2x32xf32>
    %208 = arith.addf %189, %207 : vector<2x32xf32>
    %209 = math.tanh %208 : vector<2x32xf32>
    %cst_78 = arith.constant 1.000000e+00 : f32
    %210 = vector.broadcast %cst_78 : f32 to vector<2x32xf32>
    %211 = arith.subf %210, %206 : vector<2x32xf32>
    %212 = arith.mulf %211, %209 : vector<2x32xf32>
    %213 = arith.mulf %206, %142 : vector<2x32xf32>
    %214 = arith.addf %212, %213 : vector<2x32xf32>
    %cst_79 = arith.constant dense<0.000000e+00> : vector<2x32xf32>
    %215 = tpu.matmul %214, %16, %cst_79 {dimension_numbers = #tpu.dot_dimension_numbers<[1], [0], [0], [1], [0, 0, 1, 1], [], []>} : vector<2x32xf32>, vector<32x32xf32>, vector<2x32xf32> -> vector<2x32xf32>
    %216 = vector.broadcast %28 : vector<1x32xf32> to vector<2x32xf32>
    %217 = arith.addf %215, %216 : vector<2x32xf32>
    %cst_80 = arith.constant dense<0.000000e+00> : vector<2x32xf32>
    %218 = tpu.matmul %214, %18, %cst_80 {dimension_numbers = #tpu.dot_dimension_numbers<[1], [0], [0], [1], [0, 0, 1, 1], [], []>} : vector<2x32xf32>, vector<32x32xf32>, vector<2x32xf32> -> vector<2x32xf32>
    %219 = vector.broadcast %30 : vector<1x32xf32> to vector<2x32xf32>
    %220 = arith.addf %218, %219 : vector<2x32xf32>
    %cst_81 = arith.constant dense<0.000000e+00> : vector<2x32xf32>
    %221 = tpu.matmul %214, %20, %cst_81 {dimension_numbers = #tpu.dot_dimension_numbers<[1], [0], [0], [1], [0, 0, 1, 1], [], []>} : vector<2x32xf32>, vector<32x32xf32>, vector<2x32xf32> -> vector<2x32xf32>
    %222 = vector.broadcast %32 : vector<1x32xf32> to vector<2x32xf32>
    %223 = arith.addf %221, %222 : vector<2x32xf32>
    %cst_82 = arith.constant dense<0.000000e+00> : vector<2x32xf32>
    %224 = tpu.matmul %176, %22, %cst_82 {dimension_numbers = #tpu.dot_dimension_numbers<[1], [0], [0], [1], [0, 0, 1, 1], [], []>} : vector<2x32xf32>, vector<32x32xf32>, vector<2x32xf32> -> vector<2x32xf32>
    %cst_83 = arith.constant dense<0.000000e+00> : vector<2x32xf32>
    %225 = tpu.matmul %176, %24, %cst_83 {dimension_numbers = #tpu.dot_dimension_numbers<[1], [0], [0], [1], [0, 0, 1, 1], [], []>} : vector<2x32xf32>, vector<32x32xf32>, vector<2x32xf32> -> vector<2x32xf32>
    %cst_84 = arith.constant dense<0.000000e+00> : vector<2x32xf32>
    %226 = tpu.matmul %176, %26, %cst_84 {dimension_numbers = #tpu.dot_dimension_numbers<[1], [0], [0], [1], [0, 0, 1, 1], [], []>} : vector<2x32xf32>, vector<32x32xf32>, vector<2x32xf32> -> vector<2x32xf32>
    %227 = vector.broadcast %12 : vector<1x32xf32> to vector<2x32xf32>
    %228 = arith.addf %226, %227 : vector<2x32xf32>
    %229 = arith.addf %217, %224 : vector<2x32xf32>
    %230 = arith.negf %229 : vector<2x32xf32>
    %231 = math.exp %230 : vector<2x32xf32>
    %cst_85 = arith.constant 1.000000e+00 : f32
    %232 = vector.broadcast %cst_85 : f32 to vector<2x32xf32>
    %233 = arith.addf %232, %231 : vector<2x32xf32>
    %234 = arith.divf %232, %233 : vector<2x32xf32>
    %235 = arith.addf %220, %225 : vector<2x32xf32>
    %236 = arith.negf %235 : vector<2x32xf32>
    %237 = math.exp %236 : vector<2x32xf32>
    %cst_86 = arith.constant 1.000000e+00 : f32
    %238 = vector.broadcast %cst_86 : f32 to vector<2x32xf32>
    %239 = arith.addf %238, %237 : vector<2x32xf32>
    %240 = arith.divf %238, %239 : vector<2x32xf32>
    %241 = arith.mulf %234, %228 : vector<2x32xf32>
    %242 = arith.addf %223, %241 : vector<2x32xf32>
    %243 = math.tanh %242 : vector<2x32xf32>
    %cst_87 = arith.constant 1.000000e+00 : f32
    %244 = vector.broadcast %cst_87 : f32 to vector<2x32xf32>
    %245 = arith.subf %244, %240 : vector<2x32xf32>
    %246 = arith.mulf %245, %243 : vector<2x32xf32>
    %247 = arith.mulf %240, %176 : vector<2x32xf32>
    %248 = arith.addf %246, %247 : vector<2x32xf32>
    %249 = arith.index_cast %c2_i32 : i32 to index
    %c0_88 = arith.constant 0 : index
    %c0_89 = arith.constant 0 : index
    %250 = vector.load %arg11[%249, %c0_88, %c0_89] : memref<4x2x32xf32, #tpu.memory_space<vmem>>, vector<1x2x32xf32>
    %251 = vector.shape_cast %250 : vector<1x2x32xf32> to vector<2x32xf32>
    %252 = vector.shape_cast %248 : vector<2x32xf32> to vector<1x2x32xf32>
    tpu.vector_store %arg11[%249, %c0_88, %c0_89], %252 {strides = array<i32>} : memref<4x2x32xf32, #tpu.memory_space<vmem>>, vector<1x2x32xf32>,
    %c3_i32 = arith.constant 3 : i32
    %253 = arith.index_cast %c3_i32 : i32 to index
    %c0_90 = arith.constant 0 : index
    %c0_91 = arith.constant 0 : index
    %254 = vector.load %arg1[%253, %c0_90, %c0_91] : memref<4x2x32xf32, #tpu.memory_space<vmem>>, vector<1x2x32xf32>
    %255 = vector.shape_cast %254 : vector<1x2x32xf32> to vector<2x32xf32>
    %256 = arith.index_cast %c3_i32 : i32 to index
    %c0_92 = arith.constant 0 : index
    %c0_93 = arith.constant 0 : index
    %257 = vector.load %arg2[%256, %c0_92, %c0_93] : memref<4x2x32xf32, #tpu.memory_space<vmem>>, vector<1x2x32xf32>
    %258 = vector.shape_cast %257 : vector<1x2x32xf32> to vector<2x32xf32>
    %259 = arith.index_cast %c3_i32 : i32 to index
    %c0_94 = arith.constant 0 : index
    %c0_95 = arith.constant 0 : index
    %260 = vector.load %arg3[%259, %c0_94, %c0_95] : memref<4x2x32xf32, #tpu.memory_space<vmem>>, vector<1x2x32xf32>
    %261 = vector.shape_cast %260 : vector<1x2x32xf32> to vector<2x32xf32>
    %cst_96 = arith.constant dense<0.000000e+00> : vector<2x32xf32>
    %262 = tpu.matmul %214, %6, %cst_96 {dimension_numbers = #tpu.dot_dimension_numbers<[1], [0], [0], [1], [0, 0, 1, 1], [], []>} : vector<2x32xf32>, vector<32x32xf32>, vector<2x32xf32> -> vector<2x32xf32>
    %cst_97 = arith.constant dense<0.000000e+00> : vector<2x32xf32>
    %263 = tpu.matmul %214, %8, %cst_97 {dimension_numbers = #tpu.dot_dimension_numbers<[1], [0], [0], [1], [0, 0, 1, 1], [], []>} : vector<2x32xf32>, vector<32x32xf32>, vector<2x32xf32> -> vector<2x32xf32>
    %cst_98 = arith.constant dense<0.000000e+00> : vector<2x32xf32>
    %264 = tpu.matmul %214, %10, %cst_98 {dimension_numbers = #tpu.dot_dimension_numbers<[1], [0], [0], [1], [0, 0, 1, 1], [], []>} : vector<2x32xf32>, vector<32x32xf32>, vector<2x32xf32> -> vector<2x32xf32>
    %265 = vector.broadcast %4 : vector<1x32xf32> to vector<2x32xf32>
    %266 = arith.addf %264, %265 : vector<2x32xf32>
    %267 = arith.addf %255, %262 : vector<2x32xf32>
    %268 = arith.negf %267 : vector<2x32xf32>
    %269 = math.exp %268 : vector<2x32xf32>
    %cst_99 = arith.constant 1.000000e+00 : f32
    %270 = vector.broadcast %cst_99 : f32 to vector<2x32xf32>
    %271 = arith.addf %270, %269 : vector<2x32xf32>
    %272 = arith.divf %270, %271 : vector<2x32xf32>
    %273 = arith.addf %258, %263 : vector<2x32xf32>
    %274 = arith.negf %273 : vector<2x32xf32>
    %275 = math.exp %274 : vector<2x32xf32>
    %cst_100 = arith.constant 1.000000e+00 : f32
    %276 = vector.broadcast %cst_100 : f32 to vector<2x32xf32>
    %277 = arith.addf %276, %275 : vector<2x32xf32>
    %278 = arith.divf %276, %277 : vector<2x32xf32>
    %279 = arith.mulf %272, %266 : vector<2x32xf32>
    %280 = arith.addf %261, %279 : vector<2x32xf32>
    %281 = math.tanh %280 : vector<2x32xf32>
    %cst_101 = arith.constant 1.000000e+00 : f32
    %282 = vector.broadcast %cst_101 : f32 to vector<2x32xf32>
    %283 = arith.subf %282, %278 : vector<2x32xf32>
    %284 = arith.mulf %283, %281 : vector<2x32xf32>
    %285 = arith.mulf %278, %214 : vector<2x32xf32>
    %286 = arith.addf %284, %285 : vector<2x32xf32>
    %cst_102 = arith.constant dense<0.000000e+00> : vector<2x32xf32>
    %287 = tpu.matmul %286, %16, %cst_102 {dimension_numbers = #tpu.dot_dimension_numbers<[1], [0], [0], [1], [0, 0, 1, 1], [], []>} : vector<2x32xf32>, vector<32x32xf32>, vector<2x32xf32> -> vector<2x32xf32>
    %288 = vector.broadcast %28 : vector<1x32xf32> to vector<2x32xf32>
    %289 = arith.addf %287, %288 : vector<2x32xf32>
    %cst_103 = arith.constant dense<0.000000e+00> : vector<2x32xf32>
    %290 = tpu.matmul %286, %18, %cst_103 {dimension_numbers = #tpu.dot_dimension_numbers<[1], [0], [0], [1], [0, 0, 1, 1], [], []>} : vector<2x32xf32>, vector<32x32xf32>, vector<2x32xf32> -> vector<2x32xf32>
    %291 = vector.broadcast %30 : vector<1x32xf32> to vector<2x32xf32>
    %292 = arith.addf %290, %291 : vector<2x32xf32>
    %cst_104 = arith.constant dense<0.000000e+00> : vector<2x32xf32>
    %293 = tpu.matmul %286, %20, %cst_104 {dimension_numbers = #tpu.dot_dimension_numbers<[1], [0], [0], [1], [0, 0, 1, 1], [], []>} : vector<2x32xf32>, vector<32x32xf32>, vector<2x32xf32> -> vector<2x32xf32>
    %294 = vector.broadcast %32 : vector<1x32xf32> to vector<2x32xf32>
    %295 = arith.addf %293, %294 : vector<2x32xf32>
    %cst_105 = arith.constant dense<0.000000e+00> : vector<2x32xf32>
    %296 = tpu.matmul %248, %22, %cst_105 {dimension_numbers = #tpu.dot_dimension_numbers<[1], [0], [0], [1], [0, 0, 1, 1], [], []>} : vector<2x32xf32>, vector<32x32xf32>, vector<2x32xf32> -> vector<2x32xf32>
    %cst_106 = arith.constant dense<0.000000e+00> : vector<2x32xf32>
    %297 = tpu.matmul %248, %24, %cst_106 {dimension_numbers = #tpu.dot_dimension_numbers<[1], [0], [0], [1], [0, 0, 1, 1], [], []>} : vector<2x32xf32>, vector<32x32xf32>, vector<2x32xf32> -> vector<2x32xf32>
    %cst_107 = arith.constant dense<0.000000e+00> : vector<2x32xf32>
    %298 = tpu.matmul %248, %26, %cst_107 {dimension_numbers = #tpu.dot_dimension_numbers<[1], [0], [0], [1], [0, 0, 1, 1], [], []>} : vector<2x32xf32>, vector<32x32xf32>, vector<2x32xf32> -> vector<2x32xf32>
    %299 = vector.broadcast %12 : vector<1x32xf32> to vector<2x32xf32>
    %300 = arith.addf %298, %299 : vector<2x32xf32>
    %301 = arith.addf %289, %296 : vector<2x32xf32>
    %302 = arith.negf %301 : vector<2x32xf32>
    %303 = math.exp %302 : vector<2x32xf32>
    %cst_108 = arith.constant 1.000000e+00 : f32
    %304 = vector.broadcast %cst_108 : f32 to vector<2x32xf32>
    %305 = arith.addf %304, %303 : vector<2x32xf32>
    %306 = arith.divf %304, %305 : vector<2x32xf32>
    %307 = arith.addf %292, %297 : vector<2x32xf32>
    %308 = arith.negf %307 : vector<2x32xf32>
    %309 = math.exp %308 : vector<2x32xf32>
    %cst_109 = arith.constant 1.000000e+00 : f32
    %310 = vector.broadcast %cst_109 : f32 to vector<2x32xf32>
    %311 = arith.addf %310, %309 : vector<2x32xf32>
    %312 = arith.divf %310, %311 : vector<2x32xf32>
    %313 = arith.mulf %306, %300 : vector<2x32xf32>
    %314 = arith.addf %295, %313 : vector<2x32xf32>
    %315 = math.tanh %314 : vector<2x32xf32>
    %cst_110 = arith.constant 1.000000e+00 : f32
    %316 = vector.broadcast %cst_110 : f32 to vector<2x32xf32>
    %317 = arith.subf %316, %312 : vector<2x32xf32>
    %318 = arith.mulf %317, %315 : vector<2x32xf32>
    %319 = arith.mulf %312, %248 : vector<2x32xf32>
    %320 = arith.addf %318, %319 : vector<2x32xf32>
    %321 = arith.index_cast %c3_i32 : i32 to index
    %c0_111 = arith.constant 0 : index
    %c0_112 = arith.constant 0 : index
    %322 = vector.load %arg11[%321, %c0_111, %c0_112] : memref<4x2x32xf32, #tpu.memory_space<vmem>>, vector<1x2x32xf32>
    %323 = vector.shape_cast %322 : vector<1x2x32xf32> to vector<2x32xf32>
    %324 = vector.shape_cast %320 : vector<2x32xf32> to vector<1x2x32xf32>
    tpu.vector_store %arg11[%321, %c0_111, %c0_112], %324 {strides = array<i32>} : memref<4x2x32xf32, #tpu.memory_space<vmem>>, vector<1x2x32xf32>,
    %c4_i32 = arith.constant 4 : i32
    %c0_113 = arith.constant 0 : index
    %c0_114 = arith.constant 0 : index
    %c0_115 = arith.constant 0 : index
    %325 = vector.load %arg13[%c0_113, %c0_114, %c0_115] : memref<2x2x32xf32, #tpu.memory_space<vmem>>, vector<1x2x32xf32>
    %326 = vector.shape_cast %325 : vector<1x2x32xf32> to vector<2x32xf32>
    %327 = vector.shape_cast %286 : vector<2x32xf32> to vector<1x2x32xf32>
    tpu.vector_store %arg13[%c0_113, %c0_114, %c0_115], %327 {strides = array<i32>} : memref<2x2x32xf32, #tpu.memory_space<vmem>>, vector<1x2x32xf32>,
    %c1_116 = arith.constant 1 : index
    %c0_117 = arith.constant 0 : index
    %c0_118 = arith.constant 0 : index
    %328 = vector.load %arg13[%c1_116, %c0_117, %c0_118] : memref<2x2x32xf32, #tpu.memory_space<vmem>>, vector<1x2x32xf32>
    %329 = vector.shape_cast %328 : vector<1x2x32xf32> to vector<2x32xf32>
    %330 = vector.shape_cast %320 : vector<2x32xf32> to vector<1x2x32xf32>
    tpu.vector_store %arg13[%c1_116, %c0_117, %c0_118], %330 {strides = array<i32>} : memref<2x2x32xf32, #tpu.memory_space<vmem>>, vector<1x2x32xf32>,
    %c1_i32_119 = arith.constant 1 : i32
    %331 = arith.cmpi eq, %arg0, %c1_i32_119 : i32
    %332 = arith.extui %331 : i1 to i32
    %c0_i32_120 = arith.constant 0 : i32
    %333 = arith.cmpi ne, %332, %c0_i32_120 : i32
    scf.if %333 {
      %c0_121 = arith.constant 0 : index
      %c0_122 = arith.constant 0 : index
      %c0_123 = arith.constant 0 : index
      %334 = vector.load %arg13[%c0_121, %c0_122, %c0_123] : memref<2x2x32xf32, #tpu.memory_space<vmem>>, vector<2x2x32xf32>
      %c0_124 = arith.constant 0 : index
      %c0_125 = arith.constant 0 : index
      %c0_126 = arith.constant 0 : index
      %335 = vector.load %arg12[%c0_124, %c0_125, %c0_126] : memref<2x2x32xf32, #tpu.memory_space<vmem>>, vector<2x2x32xf32>
      tpu.vector_store %arg12[%c0_124, %c0_125, %c0_126], %334 {strides = array<i32>} : memref<2x2x32xf32, #tpu.memory_space<vmem>>, vector<2x2x32xf32>,
    } else {
    }
    return
  }
  func.func @transform_0(%arg0: i32) -> (i32, i32, i32) {
    %c0_i32 = arith.constant 0 : i32
    %c0_i32_0 = arith.constant 0 : i32
    %c0_i32_1 = arith.constant 0 : i32
    return %arg0, %c0_i32, %c0_i32_0 : i32, i32, i32
  }
  func.func @transform_1(%arg0: i32) -> (i32, i32, i32) {
    %c0_i32 = arith.constant 0 : i32
    %c0_i32_0 = arith.constant 0 : i32
    %c0_i32_1 = arith.constant 0 : i32
    return %arg0, %c0_i32, %c0_i32_0 : i32, i32, i32
  }
  func.func @transform_2(%arg0: i32) -> (i32, i32, i32) {
    %c0_i32 = arith.constant 0 : i32
    %c0_i32_0 = arith.constant 0 : i32
    %c0_i32_1 = arith.constant 0 : i32
    return %arg0, %c0_i32, %c0_i32_0 : i32, i32, i32
  }
  func.func @transform_3(%arg0: i32) -> (i32, i32, i32) {
    %c0_i32 = arith.constant 0 : i32
    %c0_i32_0 = arith.constant 0 : i32
    %c0_i32_1 = arith.constant 0 : i32
    %c0_i32_2 = arith.constant 0 : i32
    return %c0_i32, %c0_i32_0, %c0_i32_1 : i32, i32, i32
  }
  func.func @transform_4(%arg0: i32) -> (i32, i32, i32) {
    %c0_i32 = arith.constant 0 : i32
    %c0_i32_0 = arith.constant 0 : i32
    %c0_i32_1 = arith.constant 0 : i32
    %c0_i32_2 = arith.constant 0 : i32
    return %c0_i32, %c0_i32_0, %c0_i32_1 : i32, i32, i32
  }
  func.func @transform_5(%arg0: i32) -> (i32, i32) {
    %c0_i32 = arith.constant 0 : i32
    %c0_i32_0 = arith.constant 0 : i32
    %c0_i32_1 = arith.constant 0 : i32
    return %c0_i32, %c0_i32_0 : i32, i32
  }
  func.func @transform_6(%arg0: i32) -> (i32, i32, i32) {
    %c0_i32 = arith.constant 0 : i32
    %c0_i32_0 = arith.constant 0 : i32
    %c0_i32_1 = arith.constant 0 : i32
    %c0_i32_2 = arith.constant 0 : i32
    return %c0_i32, %c0_i32_0, %c0_i32_1 : i32, i32, i32
  }
  func.func @transform_7(%arg0: i32) -> (i32, i32, i32) {
    %c0_i32 = arith.constant 0 : i32
    %c0_i32_0 = arith.constant 0 : i32
    %c0_i32_1 = arith.constant 0 : i32
    %c0_i32_2 = arith.constant 0 : i32
    return %c0_i32, %c0_i32_0, %c0_i32_1 : i32, i32, i32
  }
  func.func @transform_8(%arg0: i32) -> (i32, i32, i32) {
    %c0_i32 = arith.constant 0 : i32
    %c0_i32_0 = arith.constant 0 : i32
    %c0_i32_1 = arith.constant 0 : i32
    %c0_i32_2 = arith.constant 0 : i32
    return %c0_i32, %c0_i32_0, %c0_i32_1 : i32, i32, i32
  }
  func.func @transform_9(%arg0: i32) -> (i32, i32) {
    %c0_i32 = arith.constant 0 : i32
    %c0_i32_0 = arith.constant 0 : i32
    %c0_i32_1 = arith.constant 0 : i32
    return %c0_i32, %c0_i32_0 : i32, i32
  }
  func.func @transform_10(%arg0: i32) -> (i32, i32, i32) {
    %c0_i32 = arith.constant 0 : i32
    %c0_i32_0 = arith.constant 0 : i32
    %c0_i32_1 = arith.constant 0 : i32
    return %arg0, %c0_i32, %c0_i32_0 : i32, i32, i32
  }
  func.func @transform_11(%arg0: i32) -> (i32, i32, i32) {
    %c0_i32 = arith.constant 0 : i32
    %c0_i32_0 = arith.constant 0 : i32
    %c0_i32_1 = arith.constant 0 : i32
    %c0_i32_2 = arith.constant 0 : i32
    return %c0_i32, %c0_i32_0, %c0_i32_1 : i32, i32, i32
  }
}

</mosaic_0001>

<llo_original>
// kernel: tpu_custom_call.1
$region0: #{tpu_custom_call.1}
  #allocation0 [shape = 'u32[]', space=smem, size = 0x4, offset = 0x4, fixed_abs, tag = 'smem constant byte address 0x4 - core index']
  #allocation1 [shape = 'u32[72,128]{1,0:T(1,128)}', space=vmem, size = 0x9000, scoped, tag = 'internal scratch']
  #allocation2 [shape = 'f32[2,2,32]{2,1,0:T(2,128)}', space=vmem, size = 0x800, scoped, tag = 'scratch operand']
  %s0 = inlined_call_operand.hbm [shape: f32[8,2,32], index: 0, kind: input, shape index: {}]
  %s1 = inlined_call_operand.hbm [shape: f32[8,2,32], index: 1, kind: input, shape index: {}]
  %s2 = inlined_call_operand.hbm [shape: f32[8,2,32], index: 2, kind: input, shape index: {}]
  %s3 = inlined_call_operand.hbm [shape: f32[2,2,32], index: 3, kind: input, shape index: {}]
  %s4 = inlined_call_operand.hbm [shape: f32[3,32,32], index: 4, kind: input, shape index: {}]
  %s5 = inlined_call_operand.vmem [shape: f32[1,32], index: 5, kind: input, shape index: {}]
  %s6 = inlined_call_operand.hbm [shape: f32[3,32,32], index: 6, kind: input, shape index: {}]
  %s7 = inlined_call_operand.hbm [shape: f32[3,32,32], index: 7, kind: input, shape index: {}]
  %s8 = inlined_call_operand.vmem [shape: f32[3,1,32], index: 8, kind: input, shape index: {}]
  %s9 = inlined_call_operand.vmem [shape: f32[1,32], index: 9, kind: input, shape index: {}]
  %s10 = inlined_call_operand.hbm [shape: f32[8,2,32], index: 10, kind: output, shape index: {0}]
  %s11 = inlined_call_operand.hbm [shape: f32[2,2,32], index: 11, kind: output, shape index: {1}]
  %12 = xla_tuple %s10, %s11
  %s13 = sld [smem:[#allocation0]]
  $region117: #{tpu_custom_call.1} parent=0
    _
  %s15 = ssub.s32 1, %s13
  %s16 = scalar_select 0, %s15, %s13
  $region1: #{tpu_custom_call.1} parent=0
    #allocation3 [shape = 'u8[8192]{0}', space=vmem, size = 0x2000, scoped, tag = 'input window, operand 0']
    #allocation4 [shape = 's32[2]{0}', space=sflag, size = 0x8, scoped, tag = 'scoped memory for tpu_custom_call.1']
    #allocation5 [shape = 's32[2]{0}', space=sflag, size = 0x8, scoped, tag = 'scoped memory for tpu_custom_call.1']
    #allocation6 [shape = 'u8[8192]{0}', space=vmem, size = 0x2000, scoped, tag = 'input window, operand 1']
    #allocation7 [shape = 's32[2]{0}', space=sflag, size = 0x8, scoped, tag = 'scoped memory for tpu_custom_call.1']
    #allocation8 [shape = 'u8[8192]{0}', space=vmem, size = 0x2000, scoped, tag = 'input window, operand 2']
    #allocation9 [shape = 'u8[2048]{0}', space=vmem, size = 0x800, scoped, tag = 'input window, operand 3, single buffered']
    #allocation10 [shape = 's32[1]{0}', space=sflag, size = 0x4, scoped, tag = 'scoped memory for tpu_custom_call.1']
    #allocation11 [shape = 'u8[49152]{0}', space=vmem, size = 0xc000, scoped, tag = 'input window, operand 4, single buffered']
    #allocation12 [shape = 'u8[49152]{0}', space=vmem, size = 0xc000, scoped, tag = 'input window, operand 6, single buffered']
    #allocation13 [shape = 's32[1]{0}', space=sflag, size = 0x4, scoped, tag = 'scoped memory for tpu_custom_call.1']
    #allocation14 [shape = 'u8[49152]{0}', space=vmem, size = 0xc000, scoped, tag = 'input window, operand 7, single buffered']
    #allocation15 [shape = 'u8[8192]{0}', space=vmem, size = 0x2000, scoped, tag = 'output window, operand 0']
    #allocation16 [shape = 'u8[2048]{0}', space=vmem, size = 0x800, scoped, tag = 'output window, operand 1, single buffered']
    #allocation17 [shape = 's32[1]{0}', space=sflag, size = 0x4, scoped, tag = 'scoped memory for tpu_custom_call.1']
    %17 = vsyncpa [#allocation4], 0
    %s18 = scalar_lea.sflag [#allocation4], 1
    %19 = vsyncpa %s18, 0
    %20 = vsyncpa [#allocation7], 0
    %s21 = scalar_lea.sflag [#allocation7], 1
    %22 = vsyncpa %s21, 0
    %23 = vsyncpa [#allocation10], 0
    %24 = vsyncpa [#allocation13], 0
    %25 = vsyncpa [#allocation5], 0
    %s26 = scalar_lea.sflag [#allocation5], 1
    %27 = vsyncpa %s26, 0
    %28 = vsyncpa [#allocation17], 0
    loop: start=0, step=1, limit=4
    $region2: #{tpu_custom_call.1} parent=1 // loop_pre_header
      _
    $region3: #{tpu_custom_call.1} parent=1 // loop_header
      %s30 = sphi 0, %s34
      %p31 = scmp.ge.s32.totalorder %s30, 4
      %s40 = sphi 0, %s42
      %s43 = sphi 0, %s40
      %s44 = sphi 0, %s43
      %s60 = sphi 0, %s44
      %s66 = sphi 0, %s68
      %s69 = sphi 0, %s66
      %s70 = sphi 0, %s69
      %s86 = sphi 0, %s70
      %s92 = sphi 0, %s94
      %s95 = sphi 0, %s92
      %s96 = sphi 0, %s95
      %s112 = sphi 0, %s96
      %s116 = sphi 0, %s116
      %s118 = sphi 0, %s116
      %s119 = sphi 0, %s118
      %s133 = sphi 0, %s119
      %s137 = sphi 0, %s137
      %s139 = sphi 0, %s137
      %s140 = sphi 0, %s139
      %s154 = sphi 0, %s140
      %s158 = sphi 0, %s158
      %s160 = sphi 0, %s158
      %s161 = sphi 0, %s160
      %s175 = sphi 0, %s161
      %s179 = sphi 0, %s179
      %s181 = sphi 0, %s179
      %s182 = sphi 0, %s181
      %s196 = sphi 0, %s182
      %s200 = sphi 0, %s200
      %s202 = sphi 0, %s200
      %s203 = sphi 0, %s202
      %s217 = sphi 0, %s203
      %s221 = sphi 0, %s221
      %s223 = sphi 0, %s221
      %s224 = sphi 0, %s223
      %s238 = sphi 0, %s224
      %s242 = sphi 0, %s242
      %s244 = sphi 0, %s242
      %s245 = sphi 0, %s244
      %s259 = sphi 0, %s245
      %s265 = sphi 0, %s267
      %s268 = sphi 0, %s265
      %s269 = sphi 0, %s268
      %s285 = sphi 0, %s269
      %s289 = sphi 0, %s289
      %s291 = sphi 0, %s289
      %s292 = sphi 0, %s291
      %s306 = sphi 0, %s292
    $region4: #{tpu_custom_call.1} parent=1 // loop_header_branch
      %33 = sbr.rel (%p31) target = $region8
    $region5: #{tpu_custom_call.1} parent=1 // loop_body
      %s35 = ssub.s32 %s30, 1
      %s36 = ssub.s32 %s30, 2
      %s37 = sadd.s32 %s30, 1
      %s38 = ssub.s32 %s30, %s37
      %p39 = scmp.eq.s32.totalorder %s38, 0
      %s41 = sadd.s32 %s40, 1
      %s42 = scalar_select %p39, %s40, %s41
      %p45 = pneg %p39
      %p46 = scmp.eq.s32.totalorder %s30, 1
      %p47 = por %p45, %p46
      %p48 = scmp.ne.s32.totalorder %s40, %s43
      %p49 = scmp.eq.s32.totalorder %s30, 0
      %p50 = por %p48, %p49
      %p51 = scmp.ne.s32.totalorder %s40, %s43
      %p52 = scmp.eq.s32.totalorder %s35, 1
      %p53 = por %p51, %p52
      %p54 = scmp.ne.s32.totalorder %s43, %s44
      %p55 = scmp.eq.s32.totalorder %s35, 0
      %p56 = por %p54, %p55
      %p57 = scmp.ne.s32.totalorder %s43, %s44
      %p58 = scmp.eq.s32.totalorder %s36, 1
      %p59 = por %p57, %p58
      %p61 = scmp.ne.s32.totalorder %s44, %s60
      %p62 = scmp.eq.s32.totalorder %s36, 0
      %p63 = por %p61, %p62
      %s64 = ssub.s32 %s30, %s37
      %p65 = scmp.eq.s32.totalorder %s64, 0
      %s67 = sadd.s32 %s66, 1
      %s68 = scalar_select %p65, %s66, %s67
      %p71 = pneg %p65
      %p72 = scmp.eq.s32.totalorder %s30, 1
      %p73 = por %p71, %p72
      %p74 = scmp.ne.s32.totalorder %s66, %s69
      %p75 = scmp.eq.s32.totalorder %s30, 0
      %p76 = por %p74, %p75
      %p77 = scmp.ne.s32.totalorder %s66, %s69
      %p78 = scmp.eq.s32.totalorder %s35, 1
      %p79 = por %p77, %p78
      %p80 = scmp.ne.s32.totalorder %s69, %s70
      %p81 = scmp.eq.s32.totalorder %s35, 0
      %p82 = por %p80, %p81
      %p83 = scmp.ne.s32.totalorder %s69, %s70
      %p84 = scmp.eq.s32.totalorder %s36, 1
      %p85 = por %p83, %p84
      %p87 = scmp.ne.s32.totalorder %s70, %s86
      %p88 = scmp.eq.s32.totalorder %s36, 0
      %p89 = por %p87, %p88
      %s90 = ssub.s32 %s30, %s37
      %p91 = scmp.eq.s32.totalorder %s90, 0
      %s93 = sadd.s32 %s92, 1
      %s94 = scalar_select %p91, %s92, %s93
      %p97 = pneg %p91
      %p98 = scmp.eq.s32.totalorder %s30, 1
      %p99 = por %p97, %p98
      %p100 = scmp.ne.s32.totalorder %s92, %s95
      %p101 = scmp.eq.s32.totalorder %s30, 0
      %p102 = por %p100, %p101
      %p103 = scmp.ne.s32.totalorder %s92, %s95
      %p104 = scmp.eq.s32.totalorder %s35, 1
      %p105 = por %p103, %p104
      %p106 = scmp.ne.s32.totalorder %s95, %s96
      %p107 = scmp.eq.s32.totalorder %s35, 0
      %p108 = por %p106, %p107
      %p109 = scmp.ne.s32.totalorder %s95, %s96
      %p110 = scmp.eq.s32.totalorder %s36, 1
      %p111 = por %p109, %p110
      %p113 = scmp.ne.s32.totalorder %s96, %s112
      %p114 = scmp.eq.s32.totalorder %s36, 0
      %p115 = por %p113, %p114
      %s117 = sadd.s32 %s116, 1
      %p120 = scmp.eq.s32.totalorder %s30, 1
      %p121 = scmp.ne.s32.totalorder %s116, %s118
      %p122 = scmp.eq.s32.totalorder %s30, 0
      %p123 = por %p121, %p122
      %p124 = scmp.ne.s32.totalorder %s116, %s118
      %p125 = scmp.eq.s32.totalorder %s35, 1
      %p126 = por %p124, %p125
      %p127 = scmp.ne.s32.totalorder %s118, %s119
      %p128 = scmp.eq.s32.totalorder %s35, 0
      %p129 = por %p127, %p128
      %p130 = scmp.ne.s32.totalorder %s118, %s119
      %p131 = scmp.eq.s32.totalorder %s36, 1
      %p132 = por %p130, %p131
      %p134 = scmp.ne.s32.totalorder %s119, %s133
      %p135 = scmp.eq.s32.totalorder %s36, 0
      %p136 = por %p134, %p135
      %s138 = sadd.s32 %s137, 1
      %p141 = scmp.eq.s32.totalorder %s30, 1
      %p142 = scmp.ne.s32.totalorder %s137, %s139
      %p143 = scmp.eq.s32.totalorder %s30, 0
      %p144 = por %p142, %p143
      %p145 = scmp.ne.s32.totalorder %s137, %s139
      %p146 = scmp.eq.s32.totalorder %s35, 1
      %p147 = por %p145, %p146
      %p148 = scmp.ne.s32.totalorder %s139, %s140
      %p149 = scmp.eq.s32.totalorder %s35, 0
      %p150 = por %p148, %p149
      %p151 = scmp.ne.s32.totalorder %s139, %s140
      %p152 = scmp.eq.s32.totalorder %s36, 1
      %p153 = por %p151, %p152
      %p155 = scmp.ne.s32.totalorder %s140, %s154
      %p156 = scmp.eq.s32.totalorder %s36, 0
      %p157 = por %p155, %p156
      %s159 = sadd.s32 %s158, 1
      %p162 = scmp.eq.s32.totalorder %s30, 1
      %p163 = scmp.ne.s32.totalorder %s158, %s160
      %p164 = scmp.eq.s32.totalorder %s30, 0
      %p165 = por %p163, %p164
      %p166 = scmp.ne.s32.totalorder %s158, %s160
      %p167 = scmp.eq.s32.totalorder %s35, 1
      %p168 = por %p166, %p167
      %p169 = scmp.ne.s32.totalorder %s160, %s161
      %p170 = scmp.eq.s32.totalorder %s35, 0
      %p171 = por %p169, %p170
      %p172 = scmp.ne.s32.totalorder %s160, %s161
      %p173 = scmp.eq.s32.totalorder %s36, 1
      %p174 = por %p172, %p173
      %p176 = scmp.ne.s32.totalorder %s161, %s175
      %p177 = scmp.eq.s32.totalorder %s36, 0
      %p178 = por %p176, %p177
      %s180 = sadd.s32 %s179, 1
      %p183 = scmp.eq.s32.totalorder %s30, 1
      %p184 = scmp.ne.s32.totalorder %s179, %s181
      %p185 = scmp.eq.s32.totalorder %s30, 0
      %p186 = por %p184, %p185
      %p187 = scmp.ne.s32.totalorder %s179, %s181
      %p188 = scmp.eq.s32.totalorder %s35, 1
      %p189 = por %p187, %p188
      %p190 = scmp.ne.s32.totalorder %s181, %s182
      %p191 = scmp.eq.s32.totalorder %s35, 0
      %p192 = por %p190, %p191
      %p193 = scmp.ne.s32.totalorder %s181, %s182
      %p194 = scmp.eq.s32.totalorder %s36, 1
      %p195 = por %p193, %p194
      %p197 = scmp.ne.s32.totalorder %s182, %s196
      %p198 = scmp.eq.s32.totalorder %s36, 0
      %p199 = por %p197, %p198
      %s201 = sadd.s32 %s200, 1
      %p204 = scmp.eq.s32.totalorder %s30, 1
      %p205 = scmp.ne.s32.totalorder %s200, %s202
      %p206 = scmp.eq.s32.totalorder %s30, 0
      %p207 = por %p205, %p206
      %p208 = scmp.ne.s32.totalorder %s200, %s202
      %p209 = scmp.eq.s32.totalorder %s35, 1
      %p210 = por %p208, %p209
      %p211 = scmp.ne.s32.totalorder %s202, %s203
      %p212 = scmp.eq.s32.totalorder %s35, 0
      %p213 = por %p211, %p212
      %p214 = scmp.ne.s32.totalorder %s202, %s203
      %p215 = scmp.eq.s32.totalorder %s36, 1
      %p216 = por %p214, %p215
      %p218 = scmp.ne.s32.totalorder %s203, %s217
      %p219 = scmp.eq.s32.totalorder %s36, 0
      %p220 = por %p218, %p219
      %s222 = sadd.s32 %s221, 1
      %p225 = scmp.eq.s32.totalorder %s30, 1
      %p226 = scmp.ne.s32.totalorder %s221, %s223
      %p227 = scmp.eq.s32.totalorder %s30, 0
      %p228 = por %p226, %p227
      %p229 = scmp.ne.s32.totalorder %s221, %s223
      %p230 = scmp.eq.s32.totalorder %s35, 1
      %p231 = por %p229, %p230
      %p232 = scmp.ne.s32.totalorder %s223, %s224
      %p233 = scmp.eq.s32.totalorder %s35, 0
      %p234 = por %p232, %p233
      %p235 = scmp.ne.s32.totalorder %s223, %s224
      %p236 = scmp.eq.s32.totalorder %s36, 1
      %p237 = por %p235, %p236
      %p239 = scmp.ne.s32.totalorder %s224, %s238
      %p240 = scmp.eq.s32.totalorder %s36, 0
      %p241 = por %p239, %p240
      %s243 = sadd.s32 %s242, 1
      %p246 = scmp.eq.s32.totalorder %s30, 1
      %p247 = scmp.ne.s32.totalorder %s242, %s244
      %p248 = scmp.eq.s32.totalorder %s30, 0
      %p249 = por %p247, %p248
      %p250 = scmp.ne.s32.totalorder %s242, %s244
      %p251 = scmp.eq.s32.totalorder %s35, 1
      %p252 = por %p250, %p251
      %p253 = scmp.ne.s32.totalorder %s244, %s245
      %p254 = scmp.eq.s32.totalorder %s35, 0
      %p255 = por %p253, %p254
      %p256 = scmp.ne.s32.totalorder %s244, %s245
      %p257 = scmp.eq.s32.totalorder %s36, 1
      %p258 = por %p256, %p257
      %p260 = scmp.ne.s32.totalorder %s245, %s259
      %p261 = scmp.eq.s32.totalorder %s36, 0
      %p262 = por %p260, %p261
      %s263 = ssub.s32 %s30, %s37
      %p264 = scmp.eq.s32.totalorder %s263, 0
      %s266 = sadd.s32 %s265, 1
      %s267 = scalar_select %p264, %s265, %s266
      %p270 = pneg %p264
      %p271 = scmp.eq.s32.totalorder %s30, 1
      %p272 = por %p270, %p271
      %p273 = scmp.ne.s32.totalorder %s265, %s268
      %p274 = scmp.eq.s32.totalorder %s30, 0
      %p275 = por %p273, %p274
      %p276 = scmp.ne.s32.totalorder %s265, %s268
      %p277 = scmp.eq.s32.totalorder %s35, 1
      %p278 = por %p276, %p277
      %p279 = scmp.ne.s32.totalorder %s268, %s269
      %p280 = scmp.eq.s32.totalorder %s35, 0
      %p281 = por %p279, %p280
      %p282 = scmp.ne.s32.totalorder %s268, %s269
      %p283 = scmp.eq.s32.totalorder %s36, 1
      %p284 = por %p282, %p283
      %p286 = scmp.ne.s32.totalorder %s269, %s285
      %p287 = scmp.eq.s32.totalorder %s36, 0
      %p288 = por %p286, %p287
      %s290 = sadd.s32 %s289, 1
      %p293 = scmp.eq.s32.totalorder %s30, 1
      %p294 = scmp.ne.s32.totalorder %s289, %s291
      %p295 = scmp.eq.s32.totalorder %s30, 0
      %p296 = por %p294, %p295
      %p297 = scmp.ne.s32.totalorder %s289, %s291
      %p298 = scmp.eq.s32.totalorder %s35, 1
      %p299 = por %p297, %p298
      %p300 = scmp.ne.s32.totalorder %s291, %s292
      %p301 = scmp.eq.s32.totalorder %s35, 0
      %p302 = por %p300, %p301
      %p303 = scmp.ne.s32.totalorder %s291, %s292
      %p304 = scmp.eq.s32.totalorder %s36, 1
      %p305 = por %p303, %p304
      %p307 = scmp.ne.s32.totalorder %s292, %s306
      %p308 = scmp.eq.s32.totalorder %s36, 0
      %p309 = por %p307, %p308
      %p310 = scmp.le.s32.totalorder 1, %s30
      %p311 = scmp.lt.s32.totalorder %s30, 3
      %p312 = pnand %p310, %p311
      %p313 = pneg %p312
      // Predicated region
      $region9: #{tpu_custom_call.1} parent=5 // pred_check
        _
      $region10: #{tpu_custom_call.1} parent=5 // pred_check_branch
        %315 = sbr.rel (%p312) target = $region12
      $region11: #{tpu_custom_call.1} parent=5 // pred_region
        %s316 = ssub.s32 %s30, 1
        // Predicated region
        $region13: #{tpu_custom_call.1} parent=11 // pred_check
          %p317 = pneg %p129
        $region14: #{tpu_custom_call.1} parent=11 // pred_check_branch
          %319 = sbr.rel (%p317) target = $region16
        $region15: #{tpu_custom_call.1} parent=11 // pred_region
          %321 = vsyncadd [#allocation10], 0
          %s322 = sshll.u32 %s3, 4
          %s323 = int_to_ptr.hbm [resolvable:$true] %s322
          %s324 = sshll.u32 [#allocation9], 4
          %s325 = int_to_ptr.vmem [resolvable:$true] %s324
          %330 = dma.hbm_to_vmem [thread:$0]  %s323, 64, %s325, [#allocation10], 32, 32, 2
        $region16: #{tpu_custom_call.1} parent=11 // pred_fallthru
          _
        // Predicated region
        $region17: #{tpu_custom_call.1} parent=11 // pred_check
          %p331 = pneg %p150
        $region18: #{tpu_custom_call.1} parent=11 // pred_check_branch
          %333 = sbr.rel (%p331) target = $region20
        $region19: #{tpu_custom_call.1} parent=11 // pred_region
          %335 = vsyncadd [#allocation10], 0
          %s336 = sshll.u32 %s4, 4
          %s337 = int_to_ptr.hbm [resolvable:$true] %s336
          %s338 = sshll.u32 [#allocation11], 4
          %s339 = int_to_ptr.vmem [resolvable:$true] %s338
          %344 = dma.hbm_to_vmem [thread:$0]  %s337, 1536, %s339, [#allocation10], 128, 128, 8
        $region20: #{tpu_custom_call.1} parent=11 // pred_fallthru
          _
        // Predicated region
        $region21: #{tpu_custom_call.1} parent=11 // pred_check
          %p345 = pneg %p171
        $region22: #{tpu_custom_call.1} parent=11 // pred_check_branch
          %347 = sbr.rel (%p345) target = $region24
        $region23: #{tpu_custom_call.1} parent=11 // pred_region
          _
        $region24: #{tpu_custom_call.1} parent=11 // pred_fallthru
          _
        // Predicated region
        $region25: #{tpu_custom_call.1} parent=11 // pred_check
          %p348 = pneg %p192
        $region26: #{tpu_custom_call.1} parent=11 // pred_check_branch
          %350 = sbr.rel (%p348) target = $region28
        $region27: #{tpu_custom_call.1} parent=11 // pred_region
          %352 = vsyncadd [#allocation13], 0
          %s353 = sshll.u32 %s6, 4
          %s354 = int_to_ptr.hbm [resolvable:$true] %s353
          %s355 = sshll.u32 [#allocation12], 4
          %s356 = int_to_ptr.vmem [resolvable:$true] %s355
          %361 = dma.hbm_to_vmem [thread:$0]  %s354, 1536, %s356, [#allocation13], 128, 128, 8
        $region28: #{tpu_custom_call.1} parent=11 // pred_fallthru
          _
        // Predicated region
        $region29: #{tpu_custom_call.1} parent=11 // pred_check
          %p362 = pneg %p213
        $region30: #{tpu_custom_call.1} parent=11 // pred_check_branch
          %364 = sbr.rel (%p362) target = $region32
        $region31: #{tpu_custom_call.1} parent=11 // pred_region
          %366 = vsyncadd [#allocation13], 0
          %s367 = sshll.u32 %s7, 4
          %s368 = int_to_ptr.hbm [resolvable:$true] %s367
          %s369 = sshll.u32 [#allocation14], 4
          %s370 = int_to_ptr.vmem [resolvable:$true] %s369
          %375 = dma.hbm_to_vmem [thread:$0]  %s368, 1536, %s370, [#allocation13], 128, 128, 8
        $region32: #{tpu_custom_call.1} parent=11 // pred_fallthru
          _
        // Predicated region
        $region33: #{tpu_custom_call.1} parent=11 // pred_check
          %p376 = pneg %p234
        $region34: #{tpu_custom_call.1} parent=11 // pred_check_branch
          %378 = sbr.rel (%p376) target = $region36
        $region35: #{tpu_custom_call.1} parent=11 // pred_region
          _
        $region36: #{tpu_custom_call.1} parent=11 // pred_fallthru
          _
        // Predicated region
        $region37: #{tpu_custom_call.1} parent=11 // pred_check
          %p379 = pneg %p255
        $region38: #{tpu_custom_call.1} parent=11 // pred_check_branch
          %381 = sbr.rel (%p379) target = $region40
        $region39: #{tpu_custom_call.1} parent=11 // pred_region
          _
        $region40: #{tpu_custom_call.1} parent=11 // pred_fallthru
          _
      $region12: #{tpu_custom_call.1} parent=5 // pred_fallthru
        _
      %p382 = scmp.lt.s32.totalorder %s30, 2
      // Predicated region
      $region41: #{tpu_custom_call.1} parent=5 // pred_check
        %p383 = pneg %p382
      $region42: #{tpu_custom_call.1} parent=5 // pred_check_branch
        %385 = sbr.rel (%p383) target = $region44
      $region43: #{tpu_custom_call.1} parent=5 // pred_region
        // Predicated region
        $region45: #{tpu_custom_call.1} parent=43 // pred_check
          %p386 = pneg %p50
        $region46: #{tpu_custom_call.1} parent=43 // pred_check_branch
          %388 = sbr.rel (%p386) target = $region48
        $region47: #{tpu_custom_call.1} parent=43 // pred_region
          %s389 = sand.u32 %s40, 1
          %s390 = scalar_lea.sflag [#allocation4], %s389
          %s391 = sand.u32 %s40, 1
          %s392 = smul.addr %s391, 8
          %s393 = scalar_lea.vmem [#allocation3], %s392
          %s394 = smul.u32 4, %s30
          %396 = vsyncadd %s390, 0
          %s397 = smul.addr %s394, 2
          %s398 = scalar_lea.hbm %s0, %s397
          %s399 = sshll.u32 %s398, 4
          %s400 = int_to_ptr.hbm [resolvable:$true] %s399
          %s401 = sshll.u32 %s393, 4
          %s402 = int_to_ptr.vmem [resolvable:$true] %s401
          %407 = dma.hbm_to_vmem [thread:$0]  %s400, 128, %s402, %s390, 32, 32, 2
        $region48: #{tpu_custom_call.1} parent=43 // pred_fallthru
          _
        // Predicated region
        $region49: #{tpu_custom_call.1} parent=43 // pred_check
          %p408 = pneg %p76
        $region50: #{tpu_custom_call.1} parent=43 // pred_check_branch
          %410 = sbr.rel (%p408) target = $region52
        $region51: #{tpu_custom_call.1} parent=43 // pred_region
          %s411 = sand.u32 %s30, 1
          %s412 = scalar_lea.sflag [#allocation7], %s411
          %s413 = sand.u32 %s66, 1
          %s414 = smul.addr %s413, 8
          %s415 = scalar_lea.vmem [#allocation6], %s414
          %s416 = smul.u32 4, %s30
          %418 = vsyncadd %s412, 0
          %s419 = smul.addr %s416, 2
          %s420 = scalar_lea.hbm %s1, %s419
          %s421 = sshll.u32 %s420, 4
          %s422 = int_to_ptr.hbm [resolvable:$true] %s421
          %s423 = sshll.u32 %s415, 4
          %s424 = int_to_ptr.vmem [resolvable:$true] %s423
          %429 = dma.hbm_to_vmem [thread:$0]  %s422, 128, %s424, %s412, 32, 32, 2
        $region52: #{tpu_custom_call.1} parent=43 // pred_fallthru
          _
        // Predicated region
        $region53: #{tpu_custom_call.1} parent=43 // pred_check
          %p430 = pneg %p102
        $region54: #{tpu_custom_call.1} parent=43 // pred_check_branch
          %432 = sbr.rel (%p430) target = $region56
        $region55: #{tpu_custom_call.1} parent=43 // pred_region
          %s433 = sand.u32 %s30, 1
          %s434 = scalar_lea.sflag [#allocation7], %s433
          %s435 = sand.u32 %s92, 1
          %s436 = smul.addr %s435, 8
          %s437 = scalar_lea.vmem [#allocation8], %s436
          %s438 = smul.u32 4, %s30
          %440 = vsyncadd %s434, 0
          %s441 = smul.addr %s438, 2
          %s442 = scalar_lea.hbm %s2, %s441
          %s443 = sshll.u32 %s442, 4
          %s444 = int_to_ptr.hbm [resolvable:$true] %s443
          %s445 = sshll.u32 %s437, 4
          %s446 = int_to_ptr.vmem [resolvable:$true] %s445
          %451 = dma.hbm_to_vmem [thread:$0]  %s444, 128, %s446, %s434, 32, 32, 2
        $region56: #{tpu_custom_call.1} parent=43 // pred_fallthru
          _
      $region44: #{tpu_custom_call.1} parent=5 // pred_fallthru
        _
      %p452 = scmp.le.s32.totalorder 1, %s30
      %p453 = scmp.lt.s32.totalorder %s30, 3
      %p454 = pnand %p452, %p453
      %p455 = pneg %p454
      // Predicated region
      $region57: #{tpu_custom_call.1} parent=5 // pred_check
        _
      $region58: #{tpu_custom_call.1} parent=5 // pred_check_branch
        %457 = sbr.rel (%p454) target = $region60
      $region59: #{tpu_custom_call.1} parent=5 // pred_region
        %s458 = ssub.s32 %s30, 1
        %s459 = sand.u32 %s43, 1
        %s460 = scalar_lea.sflag [#allocation4], %s459
        %s461 = sand.u32 %s43, 1
        %s462 = smul.addr %s461, 8
        %s463 = scalar_lea.vmem [#allocation3], %s462
        // Predicated region
        $region61: #{tpu_custom_call.1} parent=59 // pred_check
          %p464 = pneg %p56
        $region62: #{tpu_custom_call.1} parent=59 // pred_check_branch
          %466 = sbr.rel (%p464) target = $region64
        $region63: #{tpu_custom_call.1} parent=59 // pred_region
          %468 = dma.done %s460, 128
        $region64: #{tpu_custom_call.1} parent=59 // pred_fallthru
          _
        %s469 = sand.u32 %s35, 1
        %s470 = scalar_lea.sflag [#allocation7], %s469
        %s471 = sand.u32 %s69, 1
        %s472 = smul.addr %s471, 8
        %s473 = scalar_lea.vmem [#allocation6], %s472
        // Predicated region
        $region65: #{tpu_custom_call.1} parent=59 // pred_check
          %p474 = pneg %p82
        $region66: #{tpu_custom_call.1} parent=59 // pred_check_branch
          %476 = sbr.rel (%p474) target = $region68
        $region67: #{tpu_custom_call.1} parent=59 // pred_region
          %478 = dma.done %s470, 128
        $region68: #{tpu_custom_call.1} parent=59 // pred_fallthru
          _
        %s479 = sand.u32 %s35, 1
        %s480 = scalar_lea.sflag [#allocation7], %s479
        %s481 = sand.u32 %s95, 1
        %s482 = smul.addr %s481, 8
        %s483 = scalar_lea.vmem [#allocation8], %s482
        // Predicated region
        $region69: #{tpu_custom_call.1} parent=59 // pred_check
          %p484 = pneg %p108
        $region70: #{tpu_custom_call.1} parent=59 // pred_check_branch
          %486 = sbr.rel (%p484) target = $region72
        $region71: #{tpu_custom_call.1} parent=59 // pred_region
          %488 = dma.done %s480, 128
        $region72: #{tpu_custom_call.1} parent=59 // pred_fallthru
          _
        // Predicated region
        $region73: #{tpu_custom_call.1} parent=59 // pred_check
          %p489 = pneg %p129
        $region74: #{tpu_custom_call.1} parent=59 // pred_check_branch
          %491 = sbr.rel (%p489) target = $region76
        $region75: #{tpu_custom_call.1} parent=59 // pred_region
          %493 = dma.done [#allocation10], 64
        $region76: #{tpu_custom_call.1} parent=59 // pred_fallthru
          _
        // Predicated region
        $region77: #{tpu_custom_call.1} parent=59 // pred_check
          %p494 = pneg %p150
        $region78: #{tpu_custom_call.1} parent=59 // pred_check_branch
          %496 = sbr.rel (%p494) target = $region80
        $region79: #{tpu_custom_call.1} parent=59 // pred_region
          %498 = dma.done [#allocation10], 1536
        $region80: #{tpu_custom_call.1} parent=59 // pred_fallthru
          _
        // Predicated region
        $region81: #{tpu_custom_call.1} parent=59 // pred_check
          %p499 = pneg %p192
        $region82: #{tpu_custom_call.1} parent=59 // pred_check_branch
          %501 = sbr.rel (%p499) target = $region84
        $region83: #{tpu_custom_call.1} parent=59 // pred_region
          %503 = dma.done [#allocation13], 1536
        $region84: #{tpu_custom_call.1} parent=59 // pred_fallthru
          _
        // Predicated region
        $region85: #{tpu_custom_call.1} parent=59 // pred_check
          %p504 = pneg %p213
        $region86: #{tpu_custom_call.1} parent=59 // pred_check_branch
          %506 = sbr.rel (%p504) target = $region88
        $region87: #{tpu_custom_call.1} parent=59 // pred_region
          %508 = dma.done [#allocation13], 1536
        $region88: #{tpu_custom_call.1} parent=59 // pred_fallthru
          _
        %s509 = sand.u32 %s43, 1
        %s510 = scalar_lea.sflag [#allocation4], %s509
        %s511 = sand.u32 %s43, 1
        %s512 = smul.addr %s511, 8
        %s513 = scalar_lea.vmem [#allocation3], %s512
        %p514 = pneg %p56
        %p515 = pneg %p53
        %s516 = sand.u32 %s35, 1
        %s517 = scalar_lea.sflag [#allocation7], %s516
        %s518 = sand.u32 %s69, 1
        %s519 = smul.addr %s518, 8
        %s520 = scalar_lea.vmem [#allocation6], %s519
        %p521 = pneg %p82
        %p522 = pneg %p79
        %s523 = sand.u32 %s35, 1
        %s524 = scalar_lea.sflag [#allocation7], %s523
        %s525 = sand.u32 %s95, 1
        %s526 = smul.addr %s525, 8
        %s527 = scalar_lea.vmem [#allocation8], %s526
        %p528 = pneg %p108
        %p529 = pneg %p105
        %p530 = pneg %p129
        %p531 = pneg %p126
        %p532 = pneg %p150
        %p533 = pneg %p147
        %p534 = pneg %p171
        %p535 = pneg %p168
        %p536 = pneg %p192
        %p537 = pneg %p189
        %p538 = pneg %p213
        %p539 = pneg %p210
        %p540 = pneg %p234
        %p541 = pneg %p231
        %p542 = pneg %p255
        %p543 = pneg %p252
        %p544 = pneg %p281
        %p545 = pneg %p278
        %s546 = sand.u32 %s268, 1
        %s547 = scalar_lea.sflag [#allocation5], %s546
        %s548 = sand.u32 %s268, 1
        %s549 = smul.addr %s548, 8
        %s550 = scalar_lea.vmem [#allocation15], %s549
        %p551 = pneg %p302
        %p552 = pneg %p299
        %s553 = smul.u32 4, %s35
        %s554 = smul.u32 4, %s35
        %s555 = smul.u32 4, %s35
        %s556 = smul.u32 4, %s35
        %p557 = scmp.eq.s32.totalorder %s35, 0
        // Predicated region
        $region89: #{tpu_custom_call.1} parent=59 // pred_check
          %p558 = pneg %p557
        $region90: #{tpu_custom_call.1} parent=59 // pred_check_branch
          %560 = sbr.rel (%p558) target = $region92
        $region91: #{tpu_custom_call.1} parent=59 // pred_region
          %v561 = vld [vmem:[#allocation9] sm:$0x3]
          %v562 = vld [vmem:[#allocation9 + $0x2] sm:$0x3]
          %vm563 = vcmask 254976
          %564 = vst.msk [vmem:[#allocation2] sm:$0x3] %vm563, %v561
          %565 = vst.msk [vmem:[#allocation2 + $0x2] sm:$0x3] %vm563, %v562
        $region92: #{tpu_custom_call.1} parent=59 // pred_fallthru
          _
        %v566 = vld [vmem:[#allocation11] sm:$0xff]
        %v567 = vld [vmem:[#allocation11 + $0x8] sm:$0xff]
        %v568 = vld [vmem:[#allocation11 + $0x10] sm:$0xff]
        %v569 = vld [vmem:[#allocation11 + $0x18] sm:$0xff]
        %v570 = vld [vmem:[#allocation11 + $0x20] sm:$0xff]
        %v571 = vld [vmem:[#allocation11 + $0x28] sm:$0xff]
        %v572 = vld [vmem:[#allocation11 + $0x30] sm:$0xff]
        %v573 = vld [vmem:[#allocation11 + $0x38] sm:$0xff]
        %v574 = vld [vmem:[#allocation11 + $0x40] sm:$0xff]
        %v575 = vld [vmem:[#allocation11 + $0x48] sm:$0xff]
        %v576 = vld [vmem:[#allocation11 + $0x50] sm:$0xff]
        %v577 = vld [vmem:[#allocation11 + $0x58] sm:$0xff]
        %v578 = vld [vmem:[%s5] sm:$0x1]
        %v579 = vld [vmem:[#allocation14] sm:$0xff]
        %v580 = vld [vmem:[#allocation14 + $0x8] sm:$0xff]
        %v581 = vld [vmem:[#allocation14 + $0x10] sm:$0xff]
        %v582 = vld [vmem:[#allocation14 + $0x18] sm:$0xff]
        %v583 = vld [vmem:[#allocation14 + $0x20] sm:$0xff]
        %v584 = vld [vmem:[#allocation14 + $0x28] sm:$0xff]
        %v585 = vld [vmem:[#allocation14 + $0x30] sm:$0xff]
        %v586 = vld [vmem:[#allocation14 + $0x38] sm:$0xff]
        %v587 = vld [vmem:[#allocation14 + $0x40] sm:$0xff]
        %v588 = vld [vmem:[#allocation14 + $0x48] sm:$0xff]
        %v589 = vld [vmem:[#allocation14 + $0x50] sm:$0xff]
        %v590 = vld [vmem:[#allocation14 + $0x58] sm:$0xff]
        %v591 = vld [vmem:[%s9] sm:$0x1]
        %v592 = vld [vmem:[#allocation12] sm:$0xff]
        %v593 = vld [vmem:[#allocation12 + $0x8] sm:$0xff]
        %v594 = vld [vmem:[#allocation12 + $0x10] sm:$0xff]
        %v595 = vld [vmem:[#allocation12 + $0x18] sm:$0xff]
        %v596 = vld [vmem:[#allocation12 + $0x20] sm:$0xff]
        %v597 = vld [vmem:[#allocation12 + $0x28] sm:$0xff]
        %v598 = vld [vmem:[#allocation12 + $0x30] sm:$0xff]
        %v599 = vld [vmem:[#allocation12 + $0x38] sm:$0xff]
        %v600 = vld [vmem:[#allocation12 + $0x40] sm:$0xff]
        %v601 = vld [vmem:[#allocation12 + $0x48] sm:$0xff]
        %v602 = vld [vmem:[#allocation12 + $0x50] sm:$0xff]
        %v603 = vld [vmem:[#allocation12 + $0x58] sm:$0xff]
        %v604 = vld [vmem:[%s8] sm:$0x1]
        %v605 = vld [vmem:[%s8 + $0x1] sm:$0x1]
        %v606 = vld [vmem:[%s8 + $0x2] sm:$0x1]
        %v607 = vld [vmem:[#allocation2] sm:$0x3]
        %s608 = scalar_lea.vmem [#allocation2], 2
        %v609 = vld [vmem:[%s608] sm:$0x3]
        %v610 = vld [vmem:[%s463] sm:$0x3]
        %v611 = vld [vmem:[%s473] sm:$0x3]
        %v612 = vld [vmem:[%s483] sm:$0x3]
        %vm613 = vcmask 261120
        %v615 = vsel %vm613, %v607, 0
        %617 = vmatpush.msra.mxu0 0.0
        %618 = vmatpush.msra.mxu0 0.0
        %619 = vmatpush.msra.mxu0 0.0
        %620 = vmatpush.msra.mxu0 0.0
        %621 = vmatpush.msra.mxu0 0.0
        %622 = vmatpush.msra.mxu0 0.0
        %623 = vmatpush.msra.mxu0 0.0
        %624 = vmatpush.msra.mxu0 0.0
        %625 = vmatpush.msra.mxu0 0.0
        %626 = vmatpush.msra.mxu0 0.0
        %627 = vmatpush.msra.mxu0 0.0
        %628 = vmatpush.msra.mxu0 0.0
        %629 = vmatpush.msra.mxu0 %v569
        %630 = vmatpush.msra.mxu0 %v568
        %631 = vmatpush.msra.mxu0 %v567
        %632 = vmatpush.msra.mxu0 %v566
        %633 = vmatmul.f32.gmra.mxu0 %v615
        %v634 = vpop.f32.mrf.mxu0
        %v635 = vadd.f32 0.0, %v634
        %636 = vdwg.mxu0
        %637 = vmatpush.msra.mxu0 0.0
        %638 = vmatpush.msra.mxu0 0.0
        %639 = vmatpush.msra.mxu0 0.0
        %640 = vmatpush.msra.mxu0 0.0
        %641 = vmatpush.msra.mxu0 0.0
        %642 = vmatpush.msra.mxu0 0.0
        %643 = vmatpush.msra.mxu0 0.0
        %644 = vmatpush.msra.mxu0 0.0
        %645 = vmatpush.msra.mxu0 0.0
        %646 = vmatpush.msra.mxu0 0.0
        %647 = vmatpush.msra.mxu0 0.0
        %648 = vmatpush.msra.mxu0 0.0
        %649 = vmatpush.msra.mxu0 %v573
        %650 = vmatpush.msra.mxu0 %v572
        %651 = vmatpush.msra.mxu0 %v571
        %652 = vmatpush.msra.mxu0 %v570
        %653 = vmatmul.f32.gmra.mxu0 %v615
        %v654 = vpop.f32.mrf.mxu0
        %v655 = vadd.f32 0.0, %v654
        %656 = vdwg.mxu0
        %v658 = vperm.slane %v578, 0
        %660 = vmatpush.msra.mxu0 0.0
        %661 = vmatpush.msra.mxu0 0.0
        %662 = vmatpush.msra.mxu0 0.0
        %663 = vmatpush.msra.mxu0 0.0
        %664 = vmatpush.msra.mxu0 0.0
        %665 = vmatpush.msra.mxu0 0.0
        %666 = vmatpush.msra.mxu0 0.0
        %667 = vmatpush.msra.mxu0 0.0
        %668 = vmatpush.msra.mxu0 0.0
        %669 = vmatpush.msra.mxu0 0.0
        %670 = vmatpush.msra.mxu0 0.0
        %671 = vmatpush.msra.mxu0 0.0
        %672 = vmatpush.msra.mxu0 %v577
        %673 = vmatpush.msra.mxu0 %v576
        %674 = vmatpush.msra.mxu0 %v575
        %675 = vmatpush.msra.mxu0 %v574
        %676 = vmatmul.f32.gmra.mxu0 %v615
        %v677 = vpop.f32.mrf.mxu0
        %v678 = vadd.f32 %v658, %v677
        %679 = vdwg.mxu0
        %v680 = vadd.f32 %v610, %v635
        %v681 = vxor.u32 %v680, 2147483648
        %v682 = vmul.f32 %v681, 1.442695
        %v683 = vpow.pop %v682
        %v684 = vadd.f32 %v683, 1.0
        %v685 = vrcp.pop %v684
        %v686 = vmul.f32 %v684, %v685
        %v687 = vsub.f32 1.0, %v686
        %v688 = vmul.f32 %v685, %v687
        %v689 = vadd.f32 %v685, %v688
        %vm690 = vweird.f32 %v684
        %vm691 = vweird.f32 %v685
        %vm692 = vmor %vm690, %vm691
        %v693 = vsel %vm692, %v685, %v689
        %v694 = vand.u32 2147483647, %v684
        %vm695 = vcmp.eq.f32.partialorder %v694, 8.507059e+37
        %v696 = vand.u32 %v684, 2147483648
        %v697 = vor.u32 1.1754944e-38, %v696
        %v698 = vsel %vm695, %v697, %v693
        %v699 = vmul.f32 1.0, %v698
        %v700 = vadd.f32 %v611, %v655
        %v701 = vxor.u32 %v700, 2147483648
        %v702 = vmul.f32 %v701, 1.442695
        %v703 = vpow.pop %v702
        %v704 = vadd.f32 %v703, 1.0
        %v705 = vrcp.pop %v704
        %v706 = vmul.f32 %v704, %v705
        %v707 = vsub.f32 1.0, %v706
        %v708 = vmul.f32 %v705, %v707
        %v709 = vadd.f32 %v705, %v708
        %vm710 = vweird.f32 %v704
        %vm711 = vweird.f32 %v705
        %vm712 = vmor %vm710, %vm711
        %v713 = vsel %vm712, %v705, %v709
        %v714 = vand.u32 2147483647, %v704
        %vm715 = vcmp.eq.f32.partialorder %v714, 8.507059e+37
        %v716 = vand.u32 %v704, 2147483648
        %v717 = vor.u32 1.1754944e-38, %v716
        %v718 = vsel %vm715, %v717, %v713
        %v719 = vmul.f32 1.0, %v718
        %v720 = vmul.f32 %v699, %v678
        %v721 = vadd.f32 %v612, %v720
        %v722 = vtanh.pop %v721
        %v723 = vsub.f32 1.0, %v719
        %v724 = vmul.f32 %v723, %v722
        %v725 = vmul.f32 %v719, %v607
        %v726 = vadd.f32 %v724, %v725
        %v728 = vperm.slane %v604, 0
        %v731 = vsel %vm613, %v726, 0
        %733 = vmatpush.msra.mxu0 0.0
        %734 = vmatpush.msra.mxu0 0.0
        %735 = vmatpush.msra.mxu0 0.0
        %736 = vmatpush.msra.mxu0 0.0
        %737 = vmatpush.msra.mxu0 0.0
        %738 = vmatpush.msra.mxu0 0.0
        %739 = vmatpush.msra.mxu0 0.0
        %740 = vmatpush.msra.mxu0 0.0
        %741 = vmatpush.msra.mxu0 0.0
        %742 = vmatpush.msra.mxu0 0.0
        %743 = vmatpush.msra.mxu0 0.0
        %744 = vmatpush.msra.mxu0 0.0
        %745 = vmatpush.msra.mxu0 %v595
        %746 = vmatpush.msra.mxu0 %v594
        %747 = vmatpush.msra.mxu0 %v593
        %748 = vmatpush.msra.mxu0 %v592
        %749 = vmatmul.f32.gmra.mxu0 %v731
        %v750 = vpop.f32.mrf.mxu0
        %v751 = vadd.f32 %v728, %v750
        %752 = vdwg.mxu0
        %v754 = vperm.slane %v605, 0
        %756 = vmatpush.msra.mxu0 0.0
        %757 = vmatpush.msra.mxu0 0.0
        %758 = vmatpush.msra.mxu0 0.0
        %759 = vmatpush.msra.mxu0 0.0
        %760 = vmatpush.msra.mxu0 0.0
        %761 = vmatpush.msra.mxu0 0.0
        %762 = vmatpush.msra.mxu0 0.0
        %763 = vmatpush.msra.mxu0 0.0
        %764 = vmatpush.msra.mxu0 0.0
        %765 = vmatpush.msra.mxu0 0.0
        %766 = vmatpush.msra.mxu0 0.0
        %767 = vmatpush.msra.mxu0 0.0
        %768 = vmatpush.msra.mxu0 %v599
        %769 = vmatpush.msra.mxu0 %v598
        %770 = vmatpush.msra.mxu0 %v597
        %771 = vmatpush.msra.mxu0 %v596
        %772 = vmatmul.f32.gmra.mxu0 %v731
        %v773 = vpop.f32.mrf.mxu0
        %v774 = vadd.f32 %v754, %v773
        %775 = vdwg.mxu0
        %v777 = vperm.slane %v606, 0
        %779 = vmatpush.msra.mxu0 0.0
        %780 = vmatpush.msra.mxu0 0.0
        %781 = vmatpush.msra.mxu0 0.0
        %782 = vmatpush.msra.mxu0 0.0
        %783 = vmatpush.msra.mxu0 0.0
        %784 = vmatpush.msra.mxu0 0.0
        %785 = vmatpush.msra.mxu0 0.0
        %786 = vmatpush.msra.mxu0 0.0
        %787 = vmatpush.msra.mxu0 0.0
        %788 = vmatpush.msra.mxu0 0.0
        %789 = vmatpush.msra.mxu0 0.0
        %790 = vmatpush.msra.mxu0 0.0
        %791 = vmatpush.msra.mxu0 %v603
        %792 = vmatpush.msra.mxu0 %v602
        %793 = vmatpush.msra.mxu0 %v601
        %794 = vmatpush.msra.mxu0 %v600
        %795 = vmatmul.f32.gmra.mxu0 %v731
        %v796 = vpop.f32.mrf.mxu0
        %v797 = vadd.f32 %v777, %v796
        %798 = vdwg.mxu0
        %v800 = vsel %vm613, %v609, 0
        %802 = vmatpush.msra.mxu0 0.0
        %803 = vmatpush.msra.mxu0 0.0
        %804 = vmatpush.msra.mxu0 0.0
        %805 = vmatpush.msra.mxu0 0.0
        %806 = vmatpush.msra.mxu0 0.0
        %807 = vmatpush.msra.mxu0 0.0
        %808 = vmatpush.msra.mxu0 0.0
        %809 = vmatpush.msra.mxu0 0.0
        %810 = vmatpush.msra.mxu0 0.0
        %811 = vmatpush.msra.mxu0 0.0
        %812 = vmatpush.msra.mxu0 0.0
        %813 = vmatpush.msra.mxu0 0.0
        %814 = vmatpush.msra.mxu0 %v582
        %815 = vmatpush.msra.mxu0 %v581
        %816 = vmatpush.msra.mxu0 %v580
        %817 = vmatpush.msra.mxu0 %v579
        %818 = vmatmul.f32.gmra.mxu0 %v800
        %v819 = vpop.f32.mrf.mxu0
        %v820 = vadd.f32 0.0, %v819
        %821 = vdwg.mxu0
        %822 = vmatpush.msra.mxu0 0.0
        %823 = vmatpush.msra.mxu0 0.0
        %824 = vmatpush.msra.mxu0 0.0
        %825 = vmatpush.msra.mxu0 0.0
        %826 = vmatpush.msra.mxu0 0.0
        %827 = vmatpush.msra.mxu0 0.0
        %828 = vmatpush.msra.mxu0 0.0
        %829 = vmatpush.msra.mxu0 0.0
        %830 = vmatpush.msra.mxu0 0.0
        %831 = vmatpush.msra.mxu0 0.0
        %832 = vmatpush.msra.mxu0 0.0
        %833 = vmatpush.msra.mxu0 0.0
        %834 = vmatpush.msra.mxu0 %v586
        %835 = vmatpush.msra.mxu0 %v585
        %836 = vmatpush.msra.mxu0 %v584
        %837 = vmatpush.msra.mxu0 %v583
        %838 = vmatmul.f32.gmra.mxu0 %v800
        %v839 = vpop.f32.mrf.mxu0
        %v840 = vadd.f32 0.0, %v839
        %841 = vdwg.mxu0
        %v843 = vperm.slane %v591, 0
        %845 = vmatpush.msra.mxu0 0.0
        %846 = vmatpush.msra.mxu0 0.0
        %847 = vmatpush.msra.mxu0 0.0
        %848 = vmatpush.msra.mxu0 0.0
        %849 = vmatpush.msra.mxu0 0.0
        %850 = vmatpush.msra.mxu0 0.0
        %851 = vmatpush.msra.mxu0 0.0
        %852 = vmatpush.msra.mxu0 0.0
        %853 = vmatpush.msra.mxu0 0.0
        %854 = vmatpush.msra.mxu0 0.0
        %855 = vmatpush.msra.mxu0 0.0
        %856 = vmatpush.msra.mxu0 0.0
        %857 = vmatpush.msra.mxu0 %v590
        %858 = vmatpush.msra.mxu0 %v589
        %859 = vmatpush.msra.mxu0 %v588
        %860 = vmatpush.msra.mxu0 %v587
        %861 = vmatmul.f32.gmra.mxu0 %v800
        %v862 = vpop.f32.mrf.mxu0
        %v863 = vadd.f32 %v843, %v862
        %864 = vdwg.mxu0
        %v865 = vadd.f32 %v751, %v820
        %v866 = vxor.u32 %v865, 2147483648
        %v867 = vmul.f32 %v866, 1.442695
        %v868 = vpow.pop %v867
        %v869 = vadd.f32 %v868, 1.0
        %v870 = vrcp.pop %v869
        %v871 = vmul.f32 %v869, %v870
        %v872 = vsub.f32 1.0, %v871
        %v873 = vmul.f32 %v870, %v872
        %v874 = vadd.f32 %v870, %v873
        %vm875 = vweird.f32 %v869
        %vm876 = vweird.f32 %v870
        %vm877 = vmor %vm875, %vm876
        %v878 = vsel %vm877, %v870, %v874
        %v879 = vand.u32 2147483647, %v869
        %vm880 = vcmp.eq.f32.partialorder %v879, 8.507059e+37
        %v881 = vand.u32 %v869, 2147483648
        %v882 = vor.u32 1.1754944e-38, %v881
        %v883 = vsel %vm880, %v882, %v878
        %v884 = vmul.f32 1.0, %v883
        %v885 = vadd.f32 %v774, %v840
        %v886 = vxor.u32 %v885, 2147483648
        %v887 = vmul.f32 %v886, 1.442695
        %v888 = vpow.pop %v887
        %v889 = vadd.f32 %v888, 1.0
        %v890 = vrcp.pop %v889
        %v891 = vmul.f32 %v889, %v890
        %v892 = vsub.f32 1.0, %v891
        %v893 = vmul.f32 %v890, %v892
        %v894 = vadd.f32 %v890, %v893
        %vm895 = vweird.f32 %v889
        %vm896 = vweird.f32 %v890
        %vm897 = vmor %vm895, %vm896
        %v898 = vsel %vm897, %v890, %v894
        %v899 = vand.u32 2147483647, %v889
        %vm900 = vcmp.eq.f32.partialorder %v899, 8.507059e+37
        %v901 = vand.u32 %v889, 2147483648
        %v902 = vor.u32 1.1754944e-38, %v901
        %v903 = vsel %vm900, %v902, %v898
        %v904 = vmul.f32 1.0, %v903
        %v905 = vmul.f32 %v884, %v863
        %v906 = vadd.f32 %v797, %v905
        %v907 = vtanh.pop %v906
        %v908 = vsub.f32 1.0, %v904
        %v909 = vmul.f32 %v908, %v907
        %v910 = vmul.f32 %v904, %v609
        %v911 = vadd.f32 %v909, %v910
        %vm912 = vcmask 254976
        %913 = vst.msk [vmem:[%s550] sm:$0x3] %vm912, %v911
        %s914 = scalar_lea.vmem %s463, 2 [#allocation3]
        %v915 = vld [vmem:[%s914] sm:$0x3]
        %s916 = scalar_lea.vmem %s473, 2 [#allocation6]
        %v917 = vld [vmem:[%s916] sm:$0x3]
        %s918 = scalar_lea.vmem %s483, 2 [#allocation8]
        %v919 = vld [vmem:[%s918] sm:$0x3]
        %920 = vmatpush.msra.mxu0 0.0
        %921 = vmatpush.msra.mxu0 0.0
        %922 = vmatpush.msra.mxu0 0.0
        %923 = vmatpush.msra.mxu0 0.0
        %924 = vmatpush.msra.mxu0 0.0
        %925 = vmatpush.msra.mxu0 0.0
        %926 = vmatpush.msra.mxu0 0.0
        %927 = vmatpush.msra.mxu0 0.0
        %928 = vmatpush.msra.mxu0 0.0
        %929 = vmatpush.msra.mxu0 0.0
        %930 = vmatpush.msra.mxu0 0.0
        %931 = vmatpush.msra.mxu0 0.0
        %932 = vmatpush.msra.mxu0 %v569
        %933 = vmatpush.msra.mxu0 %v568
        %934 = vmatpush.msra.mxu0 %v567
        %935 = vmatpush.msra.mxu0 %v566
        %936 = vmatmul.f32.gmra.mxu0 %v731
        %v937 = vpop.f32.mrf.mxu0
        %v938 = vadd.f32 0.0, %v937
        %939 = vdwg.mxu0
        %940 = vmatpush.msra.mxu0 0.0
        %941 = vmatpush.msra.mxu0 0.0
        %942 = vmatpush.msra.mxu0 0.0
        %943 = vmatpush.msra.mxu0 0.0
        %944 = vmatpush.msra.mxu0 0.0
        %945 = vmatpush.msra.mxu0 0.0
        %946 = vmatpush.msra.mxu0 0.0
        %947 = vmatpush.msra.mxu0 0.0
        %948 = vmatpush.msra.mxu0 0.0
        %949 = vmatpush.msra.mxu0 0.0
        %950 = vmatpush.msra.mxu0 0.0
        %951 = vmatpush.msra.mxu0 0.0
        %952 = vmatpush.msra.mxu0 %v573
        %953 = vmatpush.msra.mxu0 %v572
        %954 = vmatpush.msra.mxu0 %v571
        %955 = vmatpush.msra.mxu0 %v570
        %956 = vmatmul.f32.gmra.mxu0 %v731
        %v957 = vpop.f32.mrf.mxu0
        %v958 = vadd.f32 0.0, %v957
        %959 = vdwg.mxu0
        %960 = vmatpush.msra.mxu0 0.0
        %961 = vmatpush.msra.mxu0 0.0
        %962 = vmatpush.msra.mxu0 0.0
        %963 = vmatpush.msra.mxu0 0.0
        %964 = vmatpush.msra.mxu0 0.0
        %965 = vmatpush.msra.mxu0 0.0
        %966 = vmatpush.msra.mxu0 0.0
        %967 = vmatpush.msra.mxu0 0.0
        %968 = vmatpush.msra.mxu0 0.0
        %969 = vmatpush.msra.mxu0 0.0
        %970 = vmatpush.msra.mxu0 0.0
        %971 = vmatpush.msra.mxu0 0.0
        %972 = vmatpush.msra.mxu0 %v577
        %973 = vmatpush.msra.mxu0 %v576
        %974 = vmatpush.msra.mxu0 %v575
        %975 = vmatpush.msra.mxu0 %v574
        %976 = vmatmul.f32.gmra.mxu0 %v731
        %v977 = vpop.f32.mrf.mxu0
        %v978 = vadd.f32 %v658, %v977
        %979 = vdwg.mxu0
        %v980 = vadd.f32 %v915, %v938
        %v981 = vxor.u32 %v980, 2147483648
        %v982 = vmul.f32 %v981, 1.442695
        %v983 = vpow.pop %v982
        %v984 = vadd.f32 %v983, 1.0
        %v985 = vrcp.pop %v984
        %v986 = vmul.f32 %v984, %v985
        %v987 = vsub.f32 1.0, %v986
        %v988 = vmul.f32 %v985, %v987
        %v989 = vadd.f32 %v985, %v988
        %vm990 = vweird.f32 %v984
        %vm991 = vweird.f32 %v985
        %vm992 = vmor %vm990, %vm991
        %v993 = vsel %vm992, %v985, %v989
        %v994 = vand.u32 2147483647, %v984
        %vm995 = vcmp.eq.f32.partialorder %v994, 8.507059e+37
        %v996 = vand.u32 %v984, 2147483648
        %v997 = vor.u32 1.1754944e-38, %v996
        %v998 = vsel %vm995, %v997, %v993
        %v999 = vmul.f32 1.0, %v998
        %v1000 = vadd.f32 %v917, %v958
        %v1001 = vxor.u32 %v1000, 2147483648
        %v1002 = vmul.f32 %v1001, 1.442695
        %v1003 = vpow.pop %v1002
        %v1004 = vadd.f32 %v1003, 1.0
        %v1005 = vrcp.pop %v1004
        %v1006 = vmul.f32 %v1004, %v1005
        %v1007 = vsub.f32 1.0, %v1006
        %v1008 = vmul.f32 %v1005, %v1007
        %v1009 = vadd.f32 %v1005, %v1008
        %vm1010 = vweird.f32 %v1004
        %vm1011 = vweird.f32 %v1005
        %vm1012 = vmor %vm1010, %vm1011
        %v1013 = vsel %vm1012, %v1005, %v1009
        %v1014 = vand.u32 2147483647, %v1004
        %vm1015 = vcmp.eq.f32.partialorder %v1014, 8.507059e+37
        %v1016 = vand.u32 %v1004, 2147483648
        %v1017 = vor.u32 1.1754944e-38, %v1016
        %v1018 = vsel %vm1015, %v1017, %v1013
        %v1019 = vmul.f32 1.0, %v1018
        %v1020 = vmul.f32 %v999, %v978
        %v1021 = vadd.f32 %v919, %v1020
        %v1022 = vtanh.pop %v1021
        %v1023 = vsub.f32 1.0, %v1019
        %v1024 = vmul.f32 %v1023, %v1022
        %v1025 = vmul.f32 %v1019, %v726
        %v1026 = vadd.f32 %v1024, %v1025
        %v1028 = vsel %vm613, %v1026, 0
        %1030 = vmatpush.msra.mxu0 0.0
        %1031 = vmatpush.msra.mxu0 0.0
        %1032 = vmatpush.msra.mxu0 0.0
        %1033 = vmatpush.msra.mxu0 0.0
        %1034 = vmatpush.msra.mxu0 0.0
        %1035 = vmatpush.msra.mxu0 0.0
        %1036 = vmatpush.msra.mxu0 0.0
        %1037 = vmatpush.msra.mxu0 0.0
        %1038 = vmatpush.msra.mxu0 0.0
        %1039 = vmatpush.msra.mxu0 0.0
        %1040 = vmatpush.msra.mxu0 0.0
        %1041 = vmatpush.msra.mxu0 0.0
        %1042 = vmatpush.msra.mxu0 %v595
        %1043 = vmatpush.msra.mxu0 %v594
        %1044 = vmatpush.msra.mxu0 %v593
        %1045 = vmatpush.msra.mxu0 %v592
        %1046 = vmatmul.f32.gmra.mxu0 %v1028
        %v1047 = vpop.f32.mrf.mxu0
        %v1048 = vadd.f32 %v728, %v1047
        %1049 = vdwg.mxu0
        %1050 = vmatpush.msra.mxu0 0.0
        %1051 = vmatpush.msra.mxu0 0.0
        %1052 = vmatpush.msra.mxu0 0.0
        %1053 = vmatpush.msra.mxu0 0.0
        %1054 = vmatpush.msra.mxu0 0.0
        %1055 = vmatpush.msra.mxu0 0.0
        %1056 = vmatpush.msra.mxu0 0.0
        %1057 = vmatpush.msra.mxu0 0.0
        %1058 = vmatpush.msra.mxu0 0.0
        %1059 = vmatpush.msra.mxu0 0.0
        %1060 = vmatpush.msra.mxu0 0.0
        %1061 = vmatpush.msra.mxu0 0.0
        %1062 = vmatpush.msra.mxu0 %v599
        %1063 = vmatpush.msra.mxu0 %v598
        %1064 = vmatpush.msra.mxu0 %v597
        %1065 = vmatpush.msra.mxu0 %v596
        %1066 = vmatmul.f32.gmra.mxu0 %v1028
        %v1067 = vpop.f32.mrf.mxu0
        %v1068 = vadd.f32 %v754, %v1067
        %1069 = vdwg.mxu0
        %1070 = vmatpush.msra.mxu0 0.0
        %1071 = vmatpush.msra.mxu0 0.0
        %1072 = vmatpush.msra.mxu0 0.0
        %1073 = vmatpush.msra.mxu0 0.0
        %1074 = vmatpush.msra.mxu0 0.0
        %1075 = vmatpush.msra.mxu0 0.0
        %1076 = vmatpush.msra.mxu0 0.0
        %1077 = vmatpush.msra.mxu0 0.0
        %1078 = vmatpush.msra.mxu0 0.0
        %1079 = vmatpush.msra.mxu0 0.0
        %1080 = vmatpush.msra.mxu0 0.0
        %1081 = vmatpush.msra.mxu0 0.0
        %1082 = vmatpush.msra.mxu0 %v603
        %1083 = vmatpush.msra.mxu0 %v602
        %1084 = vmatpush.msra.mxu0 %v601
        %1085 = vmatpush.msra.mxu0 %v600
        %1086 = vmatmul.f32.gmra.mxu0 %v1028
        %v1087 = vpop.f32.mrf.mxu0
        %v1088 = vadd.f32 %v777, %v1087
        %1089 = vdwg.mxu0
        %v1091 = vsel %vm613, %v911, 0
        %1093 = vmatpush.msra.mxu0 0.0
        %1094 = vmatpush.msra.mxu0 0.0
        %1095 = vmatpush.msra.mxu0 0.0
        %1096 = vmatpush.msra.mxu0 0.0
        %1097 = vmatpush.msra.mxu0 0.0
        %1098 = vmatpush.msra.mxu0 0.0
        %1099 = vmatpush.msra.mxu0 0.0
        %1100 = vmatpush.msra.mxu0 0.0
        %1101 = vmatpush.msra.mxu0 0.0
        %1102 = vmatpush.msra.mxu0 0.0
        %1103 = vmatpush.msra.mxu0 0.0
        %1104 = vmatpush.msra.mxu0 0.0
        %1105 = vmatpush.msra.mxu0 %v582
        %1106 = vmatpush.msra.mxu0 %v581
        %1107 = vmatpush.msra.mxu0 %v580
        %1108 = vmatpush.msra.mxu0 %v579
        %1109 = vmatmul.f32.gmra.mxu0 %v1091
        %v1110 = vpop.f32.mrf.mxu0
        %v1111 = vadd.f32 0.0, %v1110
        %1112 = vdwg.mxu0
        %1113 = vmatpush.msra.mxu0 0.0
        %1114 = vmatpush.msra.mxu0 0.0
        %1115 = vmatpush.msra.mxu0 0.0
        %1116 = vmatpush.msra.mxu0 0.0
        %1117 = vmatpush.msra.mxu0 0.0
        %1118 = vmatpush.msra.mxu0 0.0
        %1119 = vmatpush.msra.mxu0 0.0
        %1120 = vmatpush.msra.mxu0 0.0
        %1121 = vmatpush.msra.mxu0 0.0
        %1122 = vmatpush.msra.mxu0 0.0
        %1123 = vmatpush.msra.mxu0 0.0
        %1124 = vmatpush.msra.mxu0 0.0
        %1125 = vmatpush.msra.mxu0 %v586
        %1126 = vmatpush.msra.mxu0 %v585
        %1127 = vmatpush.msra.mxu0 %v584
        %1128 = vmatpush.msra.mxu0 %v583
        %1129 = vmatmul.f32.gmra.mxu0 %v1091
        %v1130 = vpop.f32.mrf.mxu0
        %v1131 = vadd.f32 0.0, %v1130
        %1132 = vdwg.mxu0
        %1133 = vmatpush.msra.mxu0 0.0
        %1134 = vmatpush.msra.mxu0 0.0
        %1135 = vmatpush.msra.mxu0 0.0
        %1136 = vmatpush.msra.mxu0 0.0
        %1137 = vmatpush.msra.mxu0 0.0
        %1138 = vmatpush.msra.mxu0 0.0
        %1139 = vmatpush.msra.mxu0 0.0
        %1140 = vmatpush.msra.mxu0 0.0
        %1141 = vmatpush.msra.mxu0 0.0
        %1142 = vmatpush.msra.mxu0 0.0
        %1143 = vmatpush.msra.mxu0 0.0
        %1144 = vmatpush.msra.mxu0 0.0
        %1145 = vmatpush.msra.mxu0 %v590
        %1146 = vmatpush.msra.mxu0 %v589
        %1147 = vmatpush.msra.mxu0 %v588
        %1148 = vmatpush.msra.mxu0 %v587
        %1149 = vmatmul.f32.gmra.mxu0 %v1091
        %v1150 = vpop.f32.mrf.mxu0
        %v1151 = vadd.f32 %v843, %v1150
        %1152 = vdwg.mxu0
        %v1153 = vadd.f32 %v1048, %v1111
        %v1154 = vxor.u32 %v1153, 2147483648
        %v1155 = vmul.f32 %v1154, 1.442695
        %v1156 = vpow.pop %v1155
        %v1157 = vadd.f32 %v1156, 1.0
        %v1158 = vrcp.pop %v1157
        %v1159 = vmul.f32 %v1157, %v1158
        %v1160 = vsub.f32 1.0, %v1159
        %v1161 = vmul.f32 %v1158, %v1160
        %v1162 = vadd.f32 %v1158, %v1161
        %vm1163 = vweird.f32 %v1157
        %vm1164 = vweird.f32 %v1158
        %vm1165 = vmor %vm1163, %vm1164
        %v1166 = vsel %vm1165, %v1158, %v1162
        %v1167 = vand.u32 2147483647, %v1157
        %vm1168 = vcmp.eq.f32.partialorder %v1167, 8.507059e+37
        %v1169 = vand.u32 %v1157, 2147483648
        %v1170 = vor.u32 1.1754944e-38, %v1169
        %v1171 = vsel %vm1168, %v1170, %v1166
        %v1172 = vmul.f32 1.0, %v1171
        %v1173 = vadd.f32 %v1068, %v1131
        %v1174 = vxor.u32 %v1173, 2147483648
        %v1175 = vmul.f32 %v1174, 1.442695
        %v1176 = vpow.pop %v1175
        %v1177 = vadd.f32 %v1176, 1.0
        %v1178 = vrcp.pop %v1177
        %v1179 = vmul.f32 %v1177, %v1178
        %v1180 = vsub.f32 1.0, %v1179
        %v1181 = vmul.f32 %v1178, %v1180
        %v1182 = vadd.f32 %v1178, %v1181
        %vm1183 = vweird.f32 %v1177
        %vm1184 = vweird.f32 %v1178
        %vm1185 = vmor %vm1183, %vm1184
        %v1186 = vsel %vm1185, %v1178, %v1182
        %v1187 = vand.u32 2147483647, %v1177
        %vm1188 = vcmp.eq.f32.partialorder %v1187, 8.507059e+37
        %v1189 = vand.u32 %v1177, 2147483648
        %v1190 = vor.u32 1.1754944e-38, %v1189
        %v1191 = vsel %vm1188, %v1190, %v1186
        %v1192 = vmul.f32 1.0, %v1191
        %v1193 = vmul.f32 %v1172, %v1151
        %v1194 = vadd.f32 %v1088, %v1193
        %v1195 = vtanh.pop %v1194
        %v1196 = vsub.f32 1.0, %v1192
        %v1197 = vmul.f32 %v1196, %v1195
        %v1198 = vmul.f32 %v1192, %v911
        %v1199 = vadd.f32 %v1197, %v1198
        %s1200 = scalar_lea.vmem %s550, 2 [#allocation15]
        %1201 = vst.msk [vmem:[%s1200] sm:$0x3] %vm912, %v1199
        %s1202 = scalar_lea.vmem %s463, 4 [#allocation3]
        %v1203 = vld [vmem:[%s1202] sm:$0x3]
        %s1204 = scalar_lea.vmem %s473, 4 [#allocation6]
        %v1205 = vld [vmem:[%s1204] sm:$0x3]
        %s1206 = scalar_lea.vmem %s483, 4 [#allocation8]
        %v1207 = vld [vmem:[%s1206] sm:$0x3]
        %1208 = vmatpush.msra.mxu0 0.0
        %1209 = vmatpush.msra.mxu0 0.0
        %1210 = vmatpush.msra.mxu0 0.0
        %1211 = vmatpush.msra.mxu0 0.0
        %1212 = vmatpush.msra.mxu0 0.0
        %1213 = vmatpush.msra.mxu0 0.0
        %1214 = vmatpush.msra.mxu0 0.0
        %1215 = vmatpush.msra.mxu0 0.0
        %1216 = vmatpush.msra.mxu0 0.0
        %1217 = vmatpush.msra.mxu0 0.0
        %1218 = vmatpush.msra.mxu0 0.0
        %1219 = vmatpush.msra.mxu0 0.0
        %1220 = vmatpush.msra.mxu0 %v569
        %1221 = vmatpush.msra.mxu0 %v568
        %1222 = vmatpush.msra.mxu0 %v567
        %1223 = vmatpush.msra.mxu0 %v566
        %1224 = vmatmul.f32.gmra.mxu0 %v1028
        %v1225 = vpop.f32.mrf.mxu0
        %v1226 = vadd.f32 0.0, %v1225
        %1227 = vdwg.mxu0
        %1228 = vmatpush.msra.mxu0 0.0
        %1229 = vmatpush.msra.mxu0 0.0
        %1230 = vmatpush.msra.mxu0 0.0
        %1231 = vmatpush.msra.mxu0 0.0
        %1232 = vmatpush.msra.mxu0 0.0
        %1233 = vmatpush.msra.mxu0 0.0
        %1234 = vmatpush.msra.mxu0 0.0
        %1235 = vmatpush.msra.mxu0 0.0
        %1236 = vmatpush.msra.mxu0 0.0
        %1237 = vmatpush.msra.mxu0 0.0
        %1238 = vmatpush.msra.mxu0 0.0
        %1239 = vmatpush.msra.mxu0 0.0
        %1240 = vmatpush.msra.mxu0 %v573
        %1241 = vmatpush.msra.mxu0 %v572
        %1242 = vmatpush.msra.mxu0 %v571
        %1243 = vmatpush.msra.mxu0 %v570
        %1244 = vmatmul.f32.gmra.mxu0 %v1028
        %v1245 = vpop.f32.mrf.mxu0
        %v1246 = vadd.f32 0.0, %v1245
        %1247 = vdwg.mxu0
        %1248 = vmatpush.msra.mxu0 0.0
        %1249 = vmatpush.msra.mxu0 0.0
        %1250 = vmatpush.msra.mxu0 0.0
        %1251 = vmatpush.msra.mxu0 0.0
        %1252 = vmatpush.msra.mxu0 0.0
        %1253 = vmatpush.msra.mxu0 0.0
        %1254 = vmatpush.msra.mxu0 0.0
        %1255 = vmatpush.msra.mxu0 0.0
        %1256 = vmatpush.msra.mxu0 0.0
        %1257 = vmatpush.msra.mxu0 0.0
        %1258 = vmatpush.msra.mxu0 0.0
        %1259 = vmatpush.msra.mxu0 0.0
        %1260 = vmatpush.msra.mxu0 %v577
        %1261 = vmatpush.msra.mxu0 %v576
        %1262 = vmatpush.msra.mxu0 %v575
        %1263 = vmatpush.msra.mxu0 %v574
        %1264 = vmatmul.f32.gmra.mxu0 %v1028
        %v1265 = vpop.f32.mrf.mxu0
        %v1266 = vadd.f32 %v658, %v1265
        %1267 = vdwg.mxu0
        %v1268 = vadd.f32 %v1203, %v1226
        %v1269 = vxor.u32 %v1268, 2147483648
        %v1270 = vmul.f32 %v1269, 1.442695
        %v1271 = vpow.pop %v1270
        %v1272 = vadd.f32 %v1271, 1.0
        %v1273 = vrcp.pop %v1272
        %v1274 = vmul.f32 %v1272, %v1273
        %v1275 = vsub.f32 1.0, %v1274
        %v1276 = vmul.f32 %v1273, %v1275
        %v1277 = vadd.f32 %v1273, %v1276
        %vm1278 = vweird.f32 %v1272
        %vm1279 = vweird.f32 %v1273
        %vm1280 = vmor %vm1278, %vm1279
        %v1281 = vsel %vm1280, %v1273, %v1277
        %v1282 = vand.u32 2147483647, %v1272
        %vm1283 = vcmp.eq.f32.partialorder %v1282, 8.507059e+37
        %v1284 = vand.u32 %v1272, 2147483648
        %v1285 = vor.u32 1.1754944e-38, %v1284
        %v1286 = vsel %vm1283, %v1285, %v1281
        %v1287 = vmul.f32 1.0, %v1286
        %v1288 = vadd.f32 %v1205, %v1246
        %v1289 = vxor.u32 %v1288, 2147483648
        %v1290 = vmul.f32 %v1289, 1.442695
        %v1291 = vpow.pop %v1290
        %v1292 = vadd.f32 %v1291, 1.0
        %v1293 = vrcp.pop %v1292
        %v1294 = vmul.f32 %v1292, %v1293
        %v1295 = vsub.f32 1.0, %v1294
        %v1296 = vmul.f32 %v1293, %v1295
        %v1297 = vadd.f32 %v1293, %v1296
        %vm1298 = vweird.f32 %v1292
        %vm1299 = vweird.f32 %v1293
        %vm1300 = vmor %vm1298, %vm1299
        %v1301 = vsel %vm1300, %v1293, %v1297
        %v1302 = vand.u32 2147483647, %v1292
        %vm1303 = vcmp.eq.f32.partialorder %v1302, 8.507059e+37
        %v1304 = vand.u32 %v1292, 2147483648
        %v1305 = vor.u32 1.1754944e-38, %v1304
        %v1306 = vsel %vm1303, %v1305, %v1301
        %v1307 = vmul.f32 1.0, %v1306
        %v1308 = vmul.f32 %v1287, %v1266
        %v1309 = vadd.f32 %v1207, %v1308
        %v1310 = vtanh.pop %v1309
        %v1311 = vsub.f32 1.0, %v1307
        %v1312 = vmul.f32 %v1311, %v1310
        %v1313 = vmul.f32 %v1307, %v1026
        %v1314 = vadd.f32 %v1312, %v1313
        %v1316 = vsel %vm613, %v1314, 0
        %1318 = vmatpush.msra.mxu0 0.0
        %1319 = vmatpush.msra.mxu0 0.0
        %1320 = vmatpush.msra.mxu0 0.0
        %1321 = vmatpush.msra.mxu0 0.0
        %1322 = vmatpush.msra.mxu0 0.0
        %1323 = vmatpush.msra.mxu0 0.0
        %1324 = vmatpush.msra.mxu0 0.0
        %1325 = vmatpush.msra.mxu0 0.0
        %1326 = vmatpush.msra.mxu0 0.0
        %1327 = vmatpush.msra.mxu0 0.0
        %1328 = vmatpush.msra.mxu0 0.0
        %1329 = vmatpush.msra.mxu0 0.0
        %1330 = vmatpush.msra.mxu0 %v595
        %1331 = vmatpush.msra.mxu0 %v594
        %1332 = vmatpush.msra.mxu0 %v593
        %1333 = vmatpush.msra.mxu0 %v592
        %1334 = vmatmul.f32.gmra.mxu0 %v1316
        %v1335 = vpop.f32.mrf.mxu0
        %v1336 = vadd.f32 %v728, %v1335
        %1337 = vdwg.mxu0
        %1338 = vmatpush.msra.mxu0 0.0
        %1339 = vmatpush.msra.mxu0 0.0
        %1340 = vmatpush.msra.mxu0 0.0
        %1341 = vmatpush.msra.mxu0 0.0
        %1342 = vmatpush.msra.mxu0 0.0
        %1343 = vmatpush.msra.mxu0 0.0
        %1344 = vmatpush.msra.mxu0 0.0
        %1345 = vmatpush.msra.mxu0 0.0
        %1346 = vmatpush.msra.mxu0 0.0
        %1347 = vmatpush.msra.mxu0 0.0
        %1348 = vmatpush.msra.mxu0 0.0
        %1349 = vmatpush.msra.mxu0 0.0
        %1350 = vmatpush.msra.mxu0 %v599
        %1351 = vmatpush.msra.mxu0 %v598
        %1352 = vmatpush.msra.mxu0 %v597
        %1353 = vmatpush.msra.mxu0 %v596
        %1354 = vmatmul.f32.gmra.mxu0 %v1316
        %v1355 = vpop.f32.mrf.mxu0
        %v1356 = vadd.f32 %v754, %v1355
        %1357 = vdwg.mxu0
        %1358 = vmatpush.msra.mxu0 0.0
        %1359 = vmatpush.msra.mxu0 0.0
        %1360 = vmatpush.msra.mxu0 0.0
        %1361 = vmatpush.msra.mxu0 0.0
        %1362 = vmatpush.msra.mxu0 0.0
        %1363 = vmatpush.msra.mxu0 0.0
        %1364 = vmatpush.msra.mxu0 0.0
        %1365 = vmatpush.msra.mxu0 0.0
        %1366 = vmatpush.msra.mxu0 0.0
        %1367 = vmatpush.msra.mxu0 0.0
        %1368 = vmatpush.msra.mxu0 0.0
        %1369 = vmatpush.msra.mxu0 0.0
        %1370 = vmatpush.msra.mxu0 %v603
        %1371 = vmatpush.msra.mxu0 %v602
        %1372 = vmatpush.msra.mxu0 %v601
        %1373 = vmatpush.msra.mxu0 %v600
        %1374 = vmatmul.f32.gmra.mxu0 %v1316
        %v1375 = vpop.f32.mrf.mxu0
        %v1376 = vadd.f32 %v777, %v1375
        %1377 = vdwg.mxu0
        %v1379 = vsel %vm613, %v1199, 0
        %1381 = vmatpush.msra.mxu0 0.0
        %1382 = vmatpush.msra.mxu0 0.0
        %1383 = vmatpush.msra.mxu0 0.0
        %1384 = vmatpush.msra.mxu0 0.0
        %1385 = vmatpush.msra.mxu0 0.0
        %1386 = vmatpush.msra.mxu0 0.0
        %1387 = vmatpush.msra.mxu0 0.0
        %1388 = vmatpush.msra.mxu0 0.0
        %1389 = vmatpush.msra.mxu0 0.0
        %1390 = vmatpush.msra.mxu0 0.0
        %1391 = vmatpush.msra.mxu0 0.0
        %1392 = vmatpush.msra.mxu0 0.0
        %1393 = vmatpush.msra.mxu0 %v582
        %1394 = vmatpush.msra.mxu0 %v581
        %1395 = vmatpush.msra.mxu0 %v580
        %1396 = vmatpush.msra.mxu0 %v579
        %1397 = vmatmul.f32.gmra.mxu0 %v1379
        %v1398 = vpop.f32.mrf.mxu0
        %v1399 = vadd.f32 0.0, %v1398
        %1400 = vdwg.mxu0
        %1401 = vmatpush.msra.mxu0 0.0
        %1402 = vmatpush.msra.mxu0 0.0
        %1403 = vmatpush.msra.mxu0 0.0
        %1404 = vmatpush.msra.mxu0 0.0
        %1405 = vmatpush.msra.mxu0 0.0
        %1406 = vmatpush.msra.mxu0 0.0
        %1407 = vmatpush.msra.mxu0 0.0
        %1408 = vmatpush.msra.mxu0 0.0
        %1409 = vmatpush.msra.mxu0 0.0
        %1410 = vmatpush.msra.mxu0 0.0
        %1411 = vmatpush.msra.mxu0 0.0
        %1412 = vmatpush.msra.mxu0 0.0
        %1413 = vmatpush.msra.mxu0 %v586
        %1414 = vmatpush.msra.mxu0 %v585
        %1415 = vmatpush.msra.mxu0 %v584
        %1416 = vmatpush.msra.mxu0 %v583
        %1417 = vmatmul.f32.gmra.mxu0 %v1379
        %v1418 = vpop.f32.mrf.mxu0
        %v1419 = vadd.f32 0.0, %v1418
        %1420 = vdwg.mxu0
        %1421 = vmatpush.msra.mxu0 0.0
        %1422 = vmatpush.msra.mxu0 0.0
        %1423 = vmatpush.msra.mxu0 0.0
        %1424 = vmatpush.msra.mxu0 0.0
        %1425 = vmatpush.msra.mxu0 0.0
        %1426 = vmatpush.msra.mxu0 0.0
        %1427 = vmatpush.msra.mxu0 0.0
        %1428 = vmatpush.msra.mxu0 0.0
        %1429 = vmatpush.msra.mxu0 0.0
        %1430 = vmatpush.msra.mxu0 0.0
        %1431 = vmatpush.msra.mxu0 0.0
        %1432 = vmatpush.msra.mxu0 0.0
        %1433 = vmatpush.msra.mxu0 %v590
        %1434 = vmatpush.msra.mxu0 %v589
        %1435 = vmatpush.msra.mxu0 %v588
        %1436 = vmatpush.msra.mxu0 %v587
        %1437 = vmatmul.f32.gmra.mxu0 %v1379
        %v1438 = vpop.f32.mrf.mxu0
        %v1439 = vadd.f32 %v843, %v1438
        %1440 = vdwg.mxu0
        %v1441 = vadd.f32 %v1336, %v1399
        %v1442 = vxor.u32 %v1441, 2147483648
        %v1443 = vmul.f32 %v1442, 1.442695
        %v1444 = vpow.pop %v1443
        %v1445 = vadd.f32 %v1444, 1.0
        %v1446 = vrcp.pop %v1445
        %v1447 = vmul.f32 %v1445, %v1446
        %v1448 = vsub.f32 1.0, %v1447
        %v1449 = vmul.f32 %v1446, %v1448
        %v1450 = vadd.f32 %v1446, %v1449
        %vm1451 = vweird.f32 %v1445
        %vm1452 = vweird.f32 %v1446
        %vm1453 = vmor %vm1451, %vm1452
        %v1454 = vsel %vm1453, %v1446, %v1450
        %v1455 = vand.u32 2147483647, %v1445
        %vm1456 = vcmp.eq.f32.partialorder %v1455, 8.507059e+37
        %v1457 = vand.u32 %v1445, 2147483648
        %v1458 = vor.u32 1.1754944e-38, %v1457
        %v1459 = vsel %vm1456, %v1458, %v1454
        %v1460 = vmul.f32 1.0, %v1459
        %v1461 = vadd.f32 %v1356, %v1419
        %v1462 = vxor.u32 %v1461, 2147483648
        %v1463 = vmul.f32 %v1462, 1.442695
        %v1464 = vpow.pop %v1463
        %v1465 = vadd.f32 %v1464, 1.0
        %v1466 = vrcp.pop %v1465
        %v1467 = vmul.f32 %v1465, %v1466
        %v1468 = vsub.f32 1.0, %v1467
        %v1469 = vmul.f32 %v1466, %v1468
        %v1470 = vadd.f32 %v1466, %v1469
        %vm1471 = vweird.f32 %v1465
        %vm1472 = vweird.f32 %v1466
        %vm1473 = vmor %vm1471, %vm1472
        %v1474 = vsel %vm1473, %v1466, %v1470
        %v1475 = vand.u32 2147483647, %v1465
        %vm1476 = vcmp.eq.f32.partialorder %v1475, 8.507059e+37
        %v1477 = vand.u32 %v1465, 2147483648
        %v1478 = vor.u32 1.1754944e-38, %v1477
        %v1479 = vsel %vm1476, %v1478, %v1474
        %v1480 = vmul.f32 1.0, %v1479
        %v1481 = vmul.f32 %v1460, %v1439
        %v1482 = vadd.f32 %v1376, %v1481
        %v1483 = vtanh.pop %v1482
        %v1484 = vsub.f32 1.0, %v1480
        %v1485 = vmul.f32 %v1484, %v1483
        %v1486 = vmul.f32 %v1480, %v1199
        %v1487 = vadd.f32 %v1485, %v1486
        %s1488 = scalar_lea.vmem %s550, 4 [#allocation15]
        %1489 = vst.msk [vmem:[%s1488] sm:$0x3] %vm912, %v1487
        %s1490 = scalar_lea.vmem %s463, 6 [#allocation3]
        %v1491 = vld [vmem:[%s1490] sm:$0x3]
        %s1492 = scalar_lea.vmem %s473, 6 [#allocation6]
        %v1493 = vld [vmem:[%s1492] sm:$0x3]
        %s1494 = scalar_lea.vmem %s483, 6 [#allocation8]
        %v1495 = vld [vmem:[%s1494] sm:$0x3]
        %1496 = vmatpush.msra.mxu0 0.0
        %1497 = vmatpush.msra.mxu0 0.0
        %1498 = vmatpush.msra.mxu0 0.0
        %1499 = vmatpush.msra.mxu0 0.0
        %1500 = vmatpush.msra.mxu0 0.0
        %1501 = vmatpush.msra.mxu0 0.0
        %1502 = vmatpush.msra.mxu0 0.0
        %1503 = vmatpush.msra.mxu0 0.0
        %1504 = vmatpush.msra.mxu0 0.0
        %1505 = vmatpush.msra.mxu0 0.0
        %1506 = vmatpush.msra.mxu0 0.0
        %1507 = vmatpush.msra.mxu0 0.0
        %1508 = vmatpush.msra.mxu0 %v569
        %1509 = vmatpush.msra.mxu0 %v568
        %1510 = vmatpush.msra.mxu0 %v567
        %1511 = vmatpush.msra.mxu0 %v566
        %1512 = vmatmul.f32.gmra.mxu0 %v1316
        %v1513 = vpop.f32.mrf.mxu0
        %v1514 = vadd.f32 0.0, %v1513
        %1515 = vdwg.mxu0
        %1516 = vmatpush.msra.mxu0 0.0
        %1517 = vmatpush.msra.mxu0 0.0
        %1518 = vmatpush.msra.mxu0 0.0
        %1519 = vmatpush.msra.mxu0 0.0
        %1520 = vmatpush.msra.mxu0 0.0
        %1521 = vmatpush.msra.mxu0 0.0
        %1522 = vmatpush.msra.mxu0 0.0
        %1523 = vmatpush.msra.mxu0 0.0
        %1524 = vmatpush.msra.mxu0 0.0
        %1525 = vmatpush.msra.mxu0 0.0
        %1526 = vmatpush.msra.mxu0 0.0
        %1527 = vmatpush.msra.mxu0 0.0
        %1528 = vmatpush.msra.mxu0 %v573
        %1529 = vmatpush.msra.mxu0 %v572
        %1530 = vmatpush.msra.mxu0 %v571
        %1531 = vmatpush.msra.mxu0 %v570
        %1532 = vmatmul.f32.gmra.mxu0 %v1316
        %v1533 = vpop.f32.mrf.mxu0
        %v1534 = vadd.f32 0.0, %v1533
        %1535 = vdwg.mxu0
        %1536 = vmatpush.msra.mxu0 0.0
        %1537 = vmatpush.msra.mxu0 0.0
        %1538 = vmatpush.msra.mxu0 0.0
        %1539 = vmatpush.msra.mxu0 0.0
        %1540 = vmatpush.msra.mxu0 0.0
        %1541 = vmatpush.msra.mxu0 0.0
        %1542 = vmatpush.msra.mxu0 0.0
        %1543 = vmatpush.msra.mxu0 0.0
        %1544 = vmatpush.msra.mxu0 0.0
        %1545 = vmatpush.msra.mxu0 0.0
        %1546 = vmatpush.msra.mxu0 0.0
        %1547 = vmatpush.msra.mxu0 0.0
        %1548 = vmatpush.msra.mxu0 %v577
        %1549 = vmatpush.msra.mxu0 %v576
        %1550 = vmatpush.msra.mxu0 %v575
        %1551 = vmatpush.msra.mxu0 %v574
        %1552 = vmatmul.f32.gmra.mxu0 %v1316
        %v1553 = vpop.f32.mrf.mxu0
        %v1554 = vadd.f32 %v658, %v1553
        %1555 = vdwg.mxu0
        %v1556 = vadd.f32 %v1491, %v1514
        %v1557 = vxor.u32 %v1556, 2147483648
        %v1558 = vmul.f32 %v1557, 1.442695
        %v1559 = vpow.pop %v1558
        %v1560 = vadd.f32 %v1559, 1.0
        %v1561 = vrcp.pop %v1560
        %v1562 = vmul.f32 %v1560, %v1561
        %v1563 = vsub.f32 1.0, %v1562
        %v1564 = vmul.f32 %v1561, %v1563
        %v1565 = vadd.f32 %v1561, %v1564
        %vm1566 = vweird.f32 %v1560
        %vm1567 = vweird.f32 %v1561
        %vm1568 = vmor %vm1566, %vm1567
        %v1569 = vsel %vm1568, %v1561, %v1565
        %v1570 = vand.u32 2147483647, %v1560
        %vm1571 = vcmp.eq.f32.partialorder %v1570, 8.507059e+37
        %v1572 = vand.u32 %v1560, 2147483648
        %v1573 = vor.u32 1.1754944e-38, %v1572
        %v1574 = vsel %vm1571, %v1573, %v1569
        %v1575 = vmul.f32 1.0, %v1574
        %v1576 = vadd.f32 %v1493, %v1534
        %v1577 = vxor.u32 %v1576, 2147483648
        %v1578 = vmul.f32 %v1577, 1.442695
        %v1579 = vpow.pop %v1578
        %v1580 = vadd.f32 %v1579, 1.0
        %v1581 = vrcp.pop %v1580
        %v1582 = vmul.f32 %v1580, %v1581
        %v1583 = vsub.f32 1.0, %v1582
        %v1584 = vmul.f32 %v1581, %v1583
        %v1585 = vadd.f32 %v1581, %v1584
        %vm1586 = vweird.f32 %v1580
        %vm1587 = vweird.f32 %v1581
        %vm1588 = vmor %vm1586, %vm1587
        %v1589 = vsel %vm1588, %v1581, %v1585
        %v1590 = vand.u32 2147483647, %v1580
        %vm1591 = vcmp.eq.f32.partialorder %v1590, 8.507059e+37
        %v1592 = vand.u32 %v1580, 2147483648
        %v1593 = vor.u32 1.1754944e-38, %v1592
        %v1594 = vsel %vm1591, %v1593, %v1589
        %v1595 = vmul.f32 1.0, %v1594
        %v1596 = vmul.f32 %v1575, %v1554
        %v1597 = vadd.f32 %v1495, %v1596
        %v1598 = vtanh.pop %v1597
        %v1599 = vsub.f32 1.0, %v1595
        %v1600 = vmul.f32 %v1599, %v1598
        %v1601 = vmul.f32 %v1595, %v1314
        %v1602 = vadd.f32 %v1600, %v1601
        %v1604 = vsel %vm613, %v1602, 0
        %1606 = vmatpush.msra.mxu0 0.0
        %1607 = vmatpush.msra.mxu0 0.0
        %1608 = vmatpush.msra.mxu0 0.0
        %1609 = vmatpush.msra.mxu0 0.0
        %1610 = vmatpush.msra.mxu0 0.0
        %1611 = vmatpush.msra.mxu0 0.0
        %1612 = vmatpush.msra.mxu0 0.0
        %1613 = vmatpush.msra.mxu0 0.0
        %1614 = vmatpush.msra.mxu0 0.0
        %1615 = vmatpush.msra.mxu0 0.0
        %1616 = vmatpush.msra.mxu0 0.0
        %1617 = vmatpush.msra.mxu0 0.0
        %1618 = vmatpush.msra.mxu0 %v595
        %1619 = vmatpush.msra.mxu0 %v594
        %1620 = vmatpush.msra.mxu0 %v593
        %1621 = vmatpush.msra.mxu0 %v592
        %1622 = vmatmul.f32.gmra.mxu0 %v1604
        %v1623 = vpop.f32.mrf.mxu0
        %v1624 = vadd.f32 %v728, %v1623
        %1625 = vdwg.mxu0
        %1626 = vmatpush.msra.mxu0 0.0
        %1627 = vmatpush.msra.mxu0 0.0
        %1628 = vmatpush.msra.mxu0 0.0
        %1629 = vmatpush.msra.mxu0 0.0
        %1630 = vmatpush.msra.mxu0 0.0
        %1631 = vmatpush.msra.mxu0 0.0
        %1632 = vmatpush.msra.mxu0 0.0
        %1633 = vmatpush.msra.mxu0 0.0
        %1634 = vmatpush.msra.mxu0 0.0
        %1635 = vmatpush.msra.mxu0 0.0
        %1636 = vmatpush.msra.mxu0 0.0
        %1637 = vmatpush.msra.mxu0 0.0
        %1638 = vmatpush.msra.mxu0 %v599
        %1639 = vmatpush.msra.mxu0 %v598
        %1640 = vmatpush.msra.mxu0 %v597
        %1641 = vmatpush.msra.mxu0 %v596
        %1642 = vmatmul.f32.gmra.mxu0 %v1604
        %v1643 = vpop.f32.mrf.mxu0
        %v1644 = vadd.f32 %v754, %v1643
        %1645 = vdwg.mxu0
        %1646 = vmatpush.msra.mxu0 0.0
        %1647 = vmatpush.msra.mxu0 0.0
        %1648 = vmatpush.msra.mxu0 0.0
        %1649 = vmatpush.msra.mxu0 0.0
        %1650 = vmatpush.msra.mxu0 0.0
        %1651 = vmatpush.msra.mxu0 0.0
        %1652 = vmatpush.msra.mxu0 0.0
        %1653 = vmatpush.msra.mxu0 0.0
        %1654 = vmatpush.msra.mxu0 0.0
        %1655 = vmatpush.msra.mxu0 0.0
        %1656 = vmatpush.msra.mxu0 0.0
        %1657 = vmatpush.msra.mxu0 0.0
        %1658 = vmatpush.msra.mxu0 %v603
        %1659 = vmatpush.msra.mxu0 %v602
        %1660 = vmatpush.msra.mxu0 %v601
        %1661 = vmatpush.msra.mxu0 %v600
        %1662 = vmatmul.f32.gmra.mxu0 %v1604
        %v1663 = vpop.f32.mrf.mxu0
        %v1664 = vadd.f32 %v777, %v1663
        %1665 = vdwg.mxu0
        %v1667 = vsel %vm613, %v1487, 0
        %1669 = vmatpush.msra.mxu0 0.0
        %1670 = vmatpush.msra.mxu0 0.0
        %1671 = vmatpush.msra.mxu0 0.0
        %1672 = vmatpush.msra.mxu0 0.0
        %1673 = vmatpush.msra.mxu0 0.0
        %1674 = vmatpush.msra.mxu0 0.0
        %1675 = vmatpush.msra.mxu0 0.0
        %1676 = vmatpush.msra.mxu0 0.0
        %1677 = vmatpush.msra.mxu0 0.0
        %1678 = vmatpush.msra.mxu0 0.0
        %1679 = vmatpush.msra.mxu0 0.0
        %1680 = vmatpush.msra.mxu0 0.0
        %1681 = vmatpush.msra.mxu0 %v582
        %1682 = vmatpush.msra.mxu0 %v581
        %1683 = vmatpush.msra.mxu0 %v580
        %1684 = vmatpush.msra.mxu0 %v579
        %1685 = vmatmul.f32.gmra.mxu0 %v1667
        %v1686 = vpop.f32.mrf.mxu0
        %v1687 = vadd.f32 0.0, %v1686
        %1688 = vdwg.mxu0
        %1689 = vmatpush.msra.mxu0 0.0
        %1690 = vmatpush.msra.mxu0 0.0
        %1691 = vmatpush.msra.mxu0 0.0
        %1692 = vmatpush.msra.mxu0 0.0
        %1693 = vmatpush.msra.mxu0 0.0
        %1694 = vmatpush.msra.mxu0 0.0
        %1695 = vmatpush.msra.mxu0 0.0
        %1696 = vmatpush.msra.mxu0 0.0
        %1697 = vmatpush.msra.mxu0 0.0
        %1698 = vmatpush.msra.mxu0 0.0
        %1699 = vmatpush.msra.mxu0 0.0
        %1700 = vmatpush.msra.mxu0 0.0
        %1701 = vmatpush.msra.mxu0 %v586
        %1702 = vmatpush.msra.mxu0 %v585
        %1703 = vmatpush.msra.mxu0 %v584
        %1704 = vmatpush.msra.mxu0 %v583
        %1705 = vmatmul.f32.gmra.mxu0 %v1667
        %v1706 = vpop.f32.mrf.mxu0
        %v1707 = vadd.f32 0.0, %v1706
        %1708 = vdwg.mxu0
        %1709 = vmatpush.msra.mxu0 0.0
        %1710 = vmatpush.msra.mxu0 0.0
        %1711 = vmatpush.msra.mxu0 0.0
        %1712 = vmatpush.msra.mxu0 0.0
        %1713 = vmatpush.msra.mxu0 0.0
        %1714 = vmatpush.msra.mxu0 0.0
        %1715 = vmatpush.msra.mxu0 0.0
        %1716 = vmatpush.msra.mxu0 0.0
        %1717 = vmatpush.msra.mxu0 0.0
        %1718 = vmatpush.msra.mxu0 0.0
        %1719 = vmatpush.msra.mxu0 0.0
        %1720 = vmatpush.msra.mxu0 0.0
        %1721 = vmatpush.msra.mxu0 %v590
        %1722 = vmatpush.msra.mxu0 %v589
        %1723 = vmatpush.msra.mxu0 %v588
        %1724 = vmatpush.msra.mxu0 %v587
        %1725 = vmatmul.f32.gmra.mxu0 %v1667
        %v1726 = vpop.f32.mrf.mxu0
        %v1727 = vadd.f32 %v843, %v1726
        %1728 = vdwg.mxu0
        %v1729 = vadd.f32 %v1624, %v1687
        %v1730 = vxor.u32 %v1729, 2147483648
        %v1731 = vmul.f32 %v1730, 1.442695
        %v1732 = vpow.pop %v1731
        %v1733 = vadd.f32 %v1732, 1.0
        %v1734 = vrcp.pop %v1733
        %v1735 = vmul.f32 %v1733, %v1734
        %v1736 = vsub.f32 1.0, %v1735
        %v1737 = vmul.f32 %v1734, %v1736
        %v1738 = vadd.f32 %v1734, %v1737
        %vm1739 = vweird.f32 %v1733
        %vm1740 = vweird.f32 %v1734
        %vm1741 = vmor %vm1739, %vm1740
        %v1742 = vsel %vm1741, %v1734, %v1738
        %v1743 = vand.u32 2147483647, %v1733
        %vm1744 = vcmp.eq.f32.partialorder %v1743, 8.507059e+37
        %v1745 = vand.u32 %v1733, 2147483648
        %v1746 = vor.u32 1.1754944e-38, %v1745
        %v1747 = vsel %vm1744, %v1746, %v1742
        %v1748 = vmul.f32 1.0, %v1747
        %v1749 = vadd.f32 %v1644, %v1707
        %v1750 = vxor.u32 %v1749, 2147483648
        %v1751 = vmul.f32 %v1750, 1.442695
        %v1752 = vpow.pop %v1751
        %v1753 = vadd.f32 %v1752, 1.0
        %v1754 = vrcp.pop %v1753
        %v1755 = vmul.f32 %v1753, %v1754
        %v1756 = vsub.f32 1.0, %v1755
        %v1757 = vmul.f32 %v1754, %v1756
        %v1758 = vadd.f32 %v1754, %v1757
        %vm1759 = vweird.f32 %v1753
        %vm1760 = vweird.f32 %v1754
        %vm1761 = vmor %vm1759, %vm1760
        %v1762 = vsel %vm1761, %v1754, %v1758
        %v1763 = vand.u32 2147483647, %v1753
        %vm1764 = vcmp.eq.f32.partialorder %v1763, 8.507059e+37
        %v1765 = vand.u32 %v1753, 2147483648
        %v1766 = vor.u32 1.1754944e-38, %v1765
        %v1767 = vsel %vm1764, %v1766, %v1762
        %v1768 = vmul.f32 1.0, %v1767
        %v1769 = vmul.f32 %v1748, %v1727
        %v1770 = vadd.f32 %v1664, %v1769
        %v1771 = vtanh.pop %v1770
        %v1772 = vsub.f32 1.0, %v1768
        %v1773 = vmul.f32 %v1772, %v1771
        %v1774 = vmul.f32 %v1768, %v1487
        %v1775 = vadd.f32 %v1773, %v1774
        %s1776 = scalar_lea.vmem %s550, 6 [#allocation15]
        %1777 = vst.msk [vmem:[%s1776] sm:$0x3] %vm912, %v1775
        %1778 = vst.msk [vmem:[#allocation2] sm:$0x3] %vm912, %v1602
        %1779 = vst.msk [vmem:[%s608] sm:$0x3] %vm912, %v1775
        %p1780 = scmp.eq.s32.totalorder %s35, 1
        // Predicated region
        $region93: #{tpu_custom_call.1} parent=59 // pred_check
          %p1781 = pneg %p1780
        $region94: #{tpu_custom_call.1} parent=59 // pred_check_branch
          %1783 = sbr.rel (%p1781) target = $region96
        $region95: #{tpu_custom_call.1} parent=59 // pred_region
          %v1784 = vld [vmem:[#allocation2] sm:$0x3]
          %v1785 = vld [vmem:[#allocation2 + $0x2] sm:$0x3]
          %1786 = vst.msk [vmem:[#allocation16] sm:$0x3] %vm912, %v1784
          %1787 = vst.msk [vmem:[#allocation16 + $0x2] sm:$0x3] %vm912, %v1785
        $region96: #{tpu_custom_call.1} parent=59 // pred_fallthru
          _
        %s1788 = sand.u32 %s268, 1
        %s1789 = scalar_lea.sflag [#allocation5], %s1788
        %s1790 = sand.u32 %s268, 1
        %s1791 = smul.addr %s1790, 8
        %s1792 = scalar_lea.vmem [#allocation15], %s1791
        // Predicated region
        $region97: #{tpu_custom_call.1} parent=59 // pred_check
          %p1793 = pneg %p278
        $region98: #{tpu_custom_call.1} parent=59 // pred_check_branch
          %1795 = sbr.rel (%p1793) target = $region100
        $region99: #{tpu_custom_call.1} parent=59 // pred_region
          %s1796 = smul.u32 4, %s35
          %1798 = vsyncadd %s1789, 0
          %s1799 = smul.addr %s1796, 2
          %s1800 = scalar_lea.hbm %s10, %s1799
          %s1801 = sshll.u32 %s1792, 4
          %s1802 = int_to_ptr.vmem [resolvable:$true] %s1801
          %s1803 = sshll.u32 %s1800, 4
          %s1804 = int_to_ptr.hbm [resolvable:$true] %s1803
          %1809 = dma.vmem_to_hbm [thread:$0]  %s1802, 128, %s1804, %s1789, 32, 32, 2
        $region100: #{tpu_custom_call.1} parent=59 // pred_fallthru
          _
        // Predicated region
        $region101: #{tpu_custom_call.1} parent=59 // pred_check
          %p1810 = pneg %p299
        $region102: #{tpu_custom_call.1} parent=59 // pred_check_branch
          %1812 = sbr.rel (%p1810) target = $region104
        $region103: #{tpu_custom_call.1} parent=59 // pred_region
          %1814 = vsyncadd [#allocation17], 0
          %s1815 = sshll.u32 [#allocation16], 4
          %s1816 = int_to_ptr.vmem [resolvable:$true] %s1815
          %s1817 = sshll.u32 %s11, 4
          %s1818 = int_to_ptr.hbm [resolvable:$true] %s1817
          %1823 = dma.vmem_to_hbm [thread:$0]  %s1816, 64, %s1818, [#allocation17], 32, 32, 2
        $region104: #{tpu_custom_call.1} parent=59 // pred_fallthru
          _
        // Predicated region
        $region105: #{tpu_custom_call.1} parent=59 // pred_check
          %p1824 = pneg %p299
        $region106: #{tpu_custom_call.1} parent=59 // pred_check_branch
          %1826 = sbr.rel (%p1824) target = $region108
        $region107: #{tpu_custom_call.1} parent=59 // pred_region
          %1828 = dma.done [#allocation17], 64
        $region108: #{tpu_custom_call.1} parent=59 // pred_fallthru
          _
      $region60: #{tpu_custom_call.1} parent=5 // pred_fallthru
        _
      %p1829 = scmp.le.s32.totalorder 2, %s30
      // Predicated region
      $region109: #{tpu_custom_call.1} parent=5 // pred_check
        %p1830 = pneg %p1829
      $region110: #{tpu_custom_call.1} parent=5 // pred_check_branch
        %1832 = sbr.rel (%p1830) target = $region112
      $region111: #{tpu_custom_call.1} parent=5 // pred_region
        %s1833 = ssub.s32 %s30, 2
        // Predicated region
        $region113: #{tpu_custom_call.1} parent=111 // pred_check
          %p1834 = pneg %p284
        $region114: #{tpu_custom_call.1} parent=111 // pred_check_branch
          %1836 = sbr.rel (%p1834) target = $region116
        $region115: #{tpu_custom_call.1} parent=111 // pred_region
          %s1837 = sand.u32 %s269, 1
          %s1838 = scalar_lea.sflag [#allocation5], %s1837
          %s1839 = sand.u32 %s269, 1
          %s1840 = smul.addr %s1839, 8
          %s1841 = scalar_lea.vmem [#allocation15], %s1840
          %1843 = dma.done %s1838, 128
        $region116: #{tpu_custom_call.1} parent=111 // pred_fallthru
          _
      $region112: #{tpu_custom_call.1} parent=5 // pred_fallthru
        _
    $region6: #{tpu_custom_call.1} parent=1 // loop_footer
      %s34 = sadd.s32 1, %s30
    $region7: #{tpu_custom_call.1} parent=1 // loop_footer_branch
      %29 = sbr.rel target = $region3
    $region8: #{tpu_custom_call.1} parent=1 // loop_exit
      _
    %1844 = vsyncpa [#allocation4], 1
    %s1845 = scalar_lea.sflag [#allocation4], 1
    %1846 = vsyncpa %s1845, 1
    %1847 = vsyncpa [#allocation7], 1
    %s1848 = scalar_lea.sflag [#allocation7], 1
    %1849 = vsyncpa %s1848, 1
    %1850 = vsyncpa [#allocation10], 1
    %1851 = vsyncpa [#allocation13], 1
    %1852 = vsyncpa [#allocation5], 1
    %s1853 = scalar_lea.sflag [#allocation5], 1
    %1854 = vsyncpa %s1853, 1
    %1855 = vsyncpa [#allocation17], 1

</llo_original>
